<compile_context>
chip_gen: v6e
topology: v6e:2x2x1
jax: 0.10.0
libtpu: 0.0.40
codegen_flags: <defaults>
</compile_context>

<pallas_src>
from functools import partial

import jax
import jax.numpy as jnp
from jax.experimental import pallas as pl
from jax.experimental.pallas import tpu as pltpu


def encoder_kernel(p_ref, w1_ref, b1_ref, w2_ref, b2_ref, o_ref):
    # p_ref:  (TN*P, K)  bf16  flattened 4x4 patches of TN images (image-major)
    # w1_ref: (K, D)     bf16  patch-embed weights
    # b1_ref: (1, D)     f32
    # w2_ref: (D, Fp)    bf16  head weights, pre-scaled by 1/P, padded to Fp
    # b2_ref: (1, Fp)    f32
    # o_ref:  (TN, Fp)   f32
    tn_p, _ = p_ref.shape
    d = w1_ref.shape[1]
    tn = o_ref.shape[0]
    p_sp = tn_p // tn

    # patch-embed: M = TN*P rows feed the MXU; f32 accumulation.
    h = jnp.dot(p_ref[...], w1_ref[...], preferred_element_type=jnp.float32)
    h = jnp.maximum(h + b1_ref[...], 0.0)              # f32 bias + ReLU (VPU)
    # sum pool over spatial patches (1/P is folded into w2). D is lane-aligned,
    # so the leading-dim split reshape is layout-cheap.
    pooled = jnp.sum(h.reshape(tn, p_sp, d), axis=1)   # (TN, D) f32
    out = jnp.dot(pooled.astype(w2_ref.dtype), w2_ref[...],
                  preferred_element_type=jnp.float32)
    o_ref[...] = (out + b2_ref[...]).astype(o_ref.dtype)


def run_encoder(patches, w1, b1, w2, b2, *, tn, p_sp):
    """patches: (Np*P, K) bf16 with Np % tn == 0 -> (Np, Fp) f32."""
    n_rows, k = patches.shape
    n_total = n_rows // p_sp
    d = w1.shape[1]
    fp = w2.shape[1]
    assert n_total % tn == 0 and tn % 8 == 0

    # VMEM budget for this tiling: double-buffered input/output blocks,
    # single-buffered resident weights, plus the f32 intermediates.
    blk_in = tn * p_sp * k * 2                       # bf16 patch block
    blk_out = tn * fp * 4                            # f32 output block
    weights = (k * d + d * fp) * 2 + (d + fp) * 4    # bf16 w + f32 b, x1 buffer
    interm = tn * p_sp * d * 4 + tn * d * 4          # h + pooled (f32)
    vmem_bytes = 2 * blk_in + 2 * blk_out + weights + interm
    # Keep at least the default scoped limit; raise (with headroom) for large
    # TN; cap at 64 MiB so the request stays legal on v7x's physical VMEM.
    vmem_limit = min(max(2 * vmem_bytes, 32 << 20), 64 << 20)

    def weight_spec(shape):
        # Constant index map -> resident across grid steps; Buffered(1) avoids
        # allocating a useless second copy of the weights in VMEM.
        return pl.BlockSpec(shape, lambda n: (0, 0),
                            pipeline_mode=pl.Buffered(1))

    return pl.pallas_call(
        encoder_kernel,
        out_shape=jax.ShapeDtypeStruct((n_total, fp), jnp.float32),
        grid_spec=pltpu.PrefetchScalarGridSpec(
            num_scalar_prefetch=0,
            grid=(n_total // tn,),
            in_specs=[
                pl.BlockSpec((tn * p_sp, k), lambda n: (n, 0)),
                weight_spec((k, d)),
                weight_spec((1, d)),
                weight_spec((d, fp)),
                weight_spec((1, fp)),
            ],
            out_specs=pl.BlockSpec((tn, fp), lambda n: (n, 0)),
        ),
        compiler_params=pltpu.CompilerParams(
            dimension_semantics=("parallel",),
            vmem_limit_bytes=vmem_limit,
        ),
    )(patches, w1, b1, w2, b2)


def _choose_tn(n, p_sp, k, d, fp, vmem_budget=48 << 20):
    """Largest sublane-aligned TN fitting the VMEM budget (whole problem if it fits)."""
    n8 = ((n + 7) // 8) * 8
    per_img = 2 * (p_sp * k * 2) + 2 * (fp * 4) + p_sp * d * 4 + d * 4
    max_tn = max(8, (vmem_budget // per_img) // 8 * 8)
    tn = min(n8, max_tn)
    if tn < n8:
        # spans >1 block: prefer an even block count (v7x has 2 TensorCores
        # sharded over the "parallel" grid axis).
        blocks = -(-n8 // tn)
        if blocks % 2:
            blocks += 1
        tn = ((-(-n8 // blocks) + 7) // 8) * 8
    return tn


@partial(jax.jit, static_argnames=("patch", "tn"))
def feature_extractor_forward(x, params, patch=4, tn=None):
    """Mirror of FeatureExtractor.forward.

    x: (bs, num_patches, C, H, W) float32
    returns: (bs, num_patches, F) float32
    """
    bs, num_patches = x.shape[0], x.shape[1]
    C, H, W = x.shape[2], x.shape[3], x.shape[4]
    N = bs * num_patches
    hp, wp = H // patch, W // patch
    P = hp * wp
    K = C * patch * patch
    D = params["w1"].shape[1]
    F = params["w2"].shape[1]
    # Lane-dense output width; skip padding when F is already a multiple of 128.
    Fp = F if (F >= 128 and F % 128 == 0) else max(128, ((F + 127) // 128) * 128)

    if tn is None:
        tn = _choose_tn(N, P, K, D, Fp)

    # reshape(bs*num_patches, C, H, W) then non-overlapping 4x4 patch extraction,
    # flattened in the wrapper to (N*P, K) so the kernel's input DMA is dense.
    xb = x.reshape(N, C, H, W).astype(jnp.bfloat16)
    p = xb.reshape(N, C, hp, patch, wp, patch)
    p = jnp.transpose(p, (0, 2, 4, 1, 3, 5)).reshape(N, P, K)

    n_pad = (-N) % tn
    if n_pad:
        p = jnp.pad(p, ((0, n_pad), (0, 0), (0, 0)))
    p = p.reshape((N + n_pad) * P, K)

    w1 = params["w1"].astype(jnp.bfloat16)
    b1 = params["b1"].astype(jnp.float32)
    # fold the 1/P mean-pool scale into the head weights; pad head to Fp lanes.
    w2 = jnp.pad(params["w2"] / P, ((0, 0), (0, Fp - F))).astype(jnp.bfloat16)
    b2 = jnp.pad(params["b2"].astype(jnp.float32), ((0, 0), (0, Fp - F)))

    feat = run_encoder(p, w1, b1, w2, b2, tn=tn, p_sp=P)
    feat = jax.lax.stop_gradient(feat)          # .detach()
    # zero-padded images produce nonzero features (relu(b1) flows through the
    # head); the [:N] slice below is what makes the padding safe.
    return feat[:N, :F].reshape(bs, num_patches, F)


def init_params(key, in_dim, hidden, feat_dim):
    k1, k2, k3, k4 = jax.random.split(key, 4)
    return {
        "w1": jax.random.normal(k1, (in_dim, hidden), jnp.float32) * 0.02,
        "b1": jax.random.normal(k2, (1, hidden), jnp.float32) * 0.02,
        "w2": jax.random.normal(k3, (hidden, feat_dim), jnp.float32) * 0.02,
        "b2": jax.random.normal(k4, (1, feat_dim), jnp.float32) * 0.02,
    }


if __name__ == "__main__":
    key = jax.random.PRNGKey(0)
    kx, kp = jax.random.split(key)

    # N = 66 -> padded to 80 -> grid of 2 blocks with tn=40 (even block count
    # for v7x's two TensorCores; exercises padding + multi-block).
    bs, num_patches, C, H, W = 2, 33, 3, 16, 16
    patch = 4
    in_dim = C * patch * patch      # 48
    hidden = 128
    feat_dim = 32

    x = jax.random.normal(kx, (bs, num_patches, C, H, W), jnp.float32)
    params = init_params(kp, in_dim, hidden, feat_dim)

    out = feature_extractor_forward(x, params, patch=patch, tn=40)
    out = jax.block_until_ready(out)
    assert out.shape == (bs, num_patches, feat_dim), out.shape
    assert out.dtype == jnp.float32

    # Auto TN selection path (single block at this size) must agree.
    out_auto = feature_extractor_forward(x, params, patch=patch)
    out_auto = jax.block_until_ready(out_auto)

    # Pure-JAX reference of the same synthetic encoder: module semantics
    # (mean pool + unscaled head) with the same bf16 matmul-input precision
    # the kernel uses. The kernel's sum-pool / (w2/P) fold must match this.
    N = bs * num_patches
    pr = x.reshape(N, C, H // patch, patch, W // patch, patch)
    pr = jnp.transpose(pr, (0, 2, 4, 1, 3, 5)).reshape(N, -1, in_dim)
    h_ref = jnp.maximum(
        jnp.dot(pr.astype(jnp.bfloat16), params["w1"].astype(jnp.bfloat16),
                preferred_element_type=jnp.float32) + params["b1"], 0.0)
    pooled_ref = h_ref.mean(axis=1)
    fref = jnp.dot(pooled_ref.astype(jnp.bfloat16),
                   params["w2"].astype(jnp.bfloat16),
                   preferred_element_type=jnp.float32) + params["b2"]
    fref = fref.reshape(bs, num_patches, -1)

    max_err = float(jnp.max(jnp.abs(out - fref)))
    assert jnp.allclose(out, fref, atol=3e-3, rtol=2e-2), max_err
    max_err_auto = float(jnp.max(jnp.abs(out_auto - fref)))
    assert jnp.allclose(out_auto, fref, atol=3e-3, rtol=2e-2), max_err_auto

    print("KERNEL_OK")
</pallas_src>

<mosaic_0001>
module attributes {stable_mosaic.version = 11 : i64} {
  func.func @encoder_kernel(%arg0: i32, %arg1: memref<640x48xbf16, #tpu.memory_space<vmem>>, %arg2: memref<48x128xbf16, #tpu.memory_space<vmem>>, %arg3: memref<1x128xf32, #tpu.memory_space<vmem>>, %arg4: memref<128x128xbf16, #tpu.memory_space<vmem>>, %arg5: memref<1x128xf32, #tpu.memory_space<vmem>>, %arg6: memref<40x128xf32, #tpu.memory_space<vmem>>) attributes {dimension_semantics = [#tpu.dimension_semantics<parallel>], iteration_bounds = array<i64: 2>, scalar_prefetch = 0 : i64, scratch_operands = 0 : i64, tpu.core_type = #tpu.core_type<tc>, window_params = [{transform_indices = @transform_0, window_bounds = array<i64: 640, 48>}, {pipeline_mode = #tpu.pipeline_mode<synchronous>, transform_indices = @transform_1, window_bounds = array<i64: 48, 128>}, {pipeline_mode = #tpu.pipeline_mode<synchronous>, transform_indices = @transform_2, window_bounds = array<i64: 1, 128>}, {pipeline_mode = #tpu.pipeline_mode<synchronous>, transform_indices = @transform_3, window_bounds = array<i64: 128, 128>}, {pipeline_mode = #tpu.pipeline_mode<synchronous>, transform_indices = @transform_4, window_bounds = array<i64: 1, 128>}, {transform_indices = @transform_5, window_bounds = array<i64: 40, 128>}]} {
    %c0 = arith.constant 0 : index
    %c0_0 = arith.constant 0 : index
    %0 = vector.load %arg1[%c0, %c0_0] : memref<640x48xbf16, #tpu.memory_space<vmem>>, vector<640x48xbf16>
    %c0_1 = arith.constant 0 : index
    %c0_2 = arith.constant 0 : index
    %1 = vector.load %arg2[%c0_1, %c0_2] : memref<48x128xbf16, #tpu.memory_space<vmem>>, vector<48x128xbf16>
    %cst = arith.constant dense<0.000000e+00> : vector<640x128xf32>
    %2 = tpu.matmul %0, %1, %cst {dimension_numbers = #tpu.dot_dimension_numbers<[1], [0], [0], [1], [0, 0, 1, 1], [], []>} : vector<640x48xbf16>, vector<48x128xbf16>, vector<640x128xf32> -> vector<640x128xf32>
    %c0_3 = arith.constant 0 : index
    %c0_4 = arith.constant 0 : index
    %3 = vector.load %arg3[%c0_3, %c0_4] : memref<1x128xf32, #tpu.memory_space<vmem>>, vector<1x128xf32>
    %4 = vector.broadcast %3 : vector<1x128xf32> to vector<640x128xf32>
    %5 = arith.addf %2, %4 : vector<640x128xf32>
    %cst_5 = arith.constant 0.000000e+00 : f32
    %6 = vector.broadcast %cst_5 : f32 to vector<640x128xf32>
    %7 = arith.maximumf %5, %6 : vector<640x128xf32>
    %8 = vector.shape_cast %7 : vector<640x128xf32> to vector<40x16x128xf32>
    %cst_6 = arith.constant dense<0.000000e+00> : vector<40x128xf32>
    %9 = vector.multi_reduction <add>, %8, %cst_6 [1] : vector<40x16x128xf32> to vector<40x128xf32>
    %10 = arith.truncf %9 : vector<40x128xf32> to vector<40x128xbf16>
    %c0_7 = arith.constant 0 : index
    %c0_8 = arith.constant 0 : index
    %11 = vector.load %arg4[%c0_7, %c0_8] : memref<128x128xbf16, #tpu.memory_space<vmem>>, vector<128x128xbf16>
    %cst_9 = arith.constant dense<0.000000e+00> : vector<40x128xf32>
    %12 = tpu.matmul %10, %11, %cst_9 {dimension_numbers = #tpu.dot_dimension_numbers<[1], [0], [0], [1], [0, 0, 1, 1], [], []>} : vector<40x128xbf16>, vector<128x128xbf16>, vector<40x128xf32> -> vector<40x128xf32>
    %c0_10 = arith.constant 0 : index
    %c0_11 = arith.constant 0 : index
    %13 = vector.load %arg5[%c0_10, %c0_11] : memref<1x128xf32, #tpu.memory_space<vmem>>, vector<1x128xf32>
    %14 = vector.broadcast %13 : vector<1x128xf32> to vector<40x128xf32>
    %15 = arith.addf %12, %14 : vector<40x128xf32>
    %c0_12 = arith.constant 0 : index
    %c0_13 = arith.constant 0 : index
    %16 = vector.load %arg6[%c0_12, %c0_13] : memref<40x128xf32, #tpu.memory_space<vmem>>, vector<40x128xf32>
    tpu.vector_store %arg6[%c0_12, %c0_13], %15 {strides = array<i32>} : memref<40x128xf32, #tpu.memory_space<vmem>>, vector<40x128xf32>,
    return
  }
  func.func @transform_0(%arg0: i32) -> (i32, i32) {
    %c0_i32 = arith.constant 0 : i32
    %c0_i32_0 = arith.constant 0 : i32
    return %arg0, %c0_i32 : i32, i32
  }
  func.func @transform_1(%arg0: i32) -> (i32, i32) {
    %c0_i32 = arith.constant 0 : i32
    %c0_i32_0 = arith.constant 0 : i32
    %c0_i32_1 = arith.constant 0 : i32
    return %c0_i32, %c0_i32_0 : i32, i32
  }
  func.func @transform_2(%arg0: i32) -> (i32, i32) {
    %c0_i32 = arith.constant 0 : i32
    %c0_i32_0 = arith.constant 0 : i32
    %c0_i32_1 = arith.constant 0 : i32
    return %c0_i32, %c0_i32_0 : i32, i32
  }
  func.func @transform_3(%arg0: i32) -> (i32, i32) {
    %c0_i32 = arith.constant 0 : i32
    %c0_i32_0 = arith.constant 0 : i32
    %c0_i32_1 = arith.constant 0 : i32
    return %c0_i32, %c0_i32_0 : i32, i32
  }
  func.func @transform_4(%arg0: i32) -> (i32, i32) {
    %c0_i32 = arith.constant 0 : i32
    %c0_i32_0 = arith.constant 0 : i32
    %c0_i32_1 = arith.constant 0 : i32
    return %c0_i32, %c0_i32_0 : i32, i32
  }
  func.func @transform_5(%arg0: i32) -> (i32, i32) {
    %c0_i32 = arith.constant 0 : i32
    %c0_i32_0 = arith.constant 0 : i32
    return %arg0, %c0_i32 : i32, i32
  }
}

</mosaic_0001>

<llo_original>
// kernel: feature_extractor_forward.1
$region0: #{feature_extractor_forward.1}
  #allocation0 [shape = 'u32[]', space=smem, size = 0x4, offset = 0x4, fixed_abs, tag = 'smem constant byte address 0x4 - core index']
  #allocation1 [shape = 'u32[144,128]{1,0:T(1,128)}', space=vmem, size = 0x12000, scoped, tag = 'internal scratch']
  %s0 = inlined_call_operand.vmem [shape: bf16[1280,48], index: 0, kind: input, shape index: {}]
  %s1 = inlined_call_operand.vmem [shape: bf16[48,128], index: 1, kind: input, shape index: {}]
  %s2 = inlined_call_operand.vmem [shape: f32[1,128], index: 2, kind: input, shape index: {}]
  %s3 = inlined_call_operand.vmem [shape: bf16[128,128], index: 3, kind: input, shape index: {}]
  %s4 = inlined_call_operand.vmem [shape: f32[1,128], index: 4, kind: input, shape index: {}]
  %s5 = inlined_call_operand.vmem [shape: f32[80,128], index: 5, kind: output, shape index: {}]
  %s6 = sld [smem:[#allocation0]]
  $region53: #{feature_extractor_forward.1} parent=0
    _
  %s8 = ssub.s32 1, %s6
  %s9 = scalar_select 0, %s8, %s6
  loop: start=0, step=1, limit=4
  $region2: #{feature_extractor_forward.1} parent=0 // loop_pre_header
    _
  $region3: #{feature_extractor_forward.1} parent=0 // loop_header
    %s11 = sphi 0, %s15
    %p12 = scmp.ge.s32.totalorder %s11, 4
    %s21 = sphi 0, %s23
    %s24 = sphi 0, %s21
    %s25 = sphi 0, %s24
    %s41 = sphi 0, %s25
    %s45 = sphi 0, %s45
    %s47 = sphi 0, %s45
    %s48 = sphi 0, %s47
    %s62 = sphi 0, %s48
    %s66 = sphi 0, %s66
    %s68 = sphi 0, %s66
    %s69 = sphi 0, %s68
    %s83 = sphi 0, %s69
    %s87 = sphi 0, %s87
    %s89 = sphi 0, %s87
    %s90 = sphi 0, %s89
    %s104 = sphi 0, %s90
    %s108 = sphi 0, %s108
    %s110 = sphi 0, %s108
    %s111 = sphi 0, %s110
    %s125 = sphi 0, %s111
    %s131 = sphi 0, %s133
    %s134 = sphi 0, %s131
    %s135 = sphi 0, %s134
    %s151 = sphi 0, %s135
  $region4: #{feature_extractor_forward.1} parent=0 // loop_header_branch
    %14 = sbr.rel (%p12) target = $region8
  $region5: #{feature_extractor_forward.1} parent=0 // loop_body
    %s16 = ssub.s32 %s11, 1
    %s17 = ssub.s32 %s11, 2
    %s18 = sadd.s32 %s11, 1
    %s19 = ssub.s32 %s11, %s18
    %p20 = scmp.eq.s32.totalorder %s19, 0
    %s22 = sadd.s32 %s21, 1
    %s23 = scalar_select %p20, %s21, %s22
    %p26 = pneg %p20
    %p27 = scmp.eq.s32.totalorder %s11, 1
    %p28 = por %p26, %p27
    %p29 = scmp.ne.s32.totalorder %s21, %s24
    %p30 = scmp.eq.s32.totalorder %s11, 0
    %p31 = por %p29, %p30
    %p32 = scmp.ne.s32.totalorder %s21, %s24
    %p33 = scmp.eq.s32.totalorder %s16, 1
    %p34 = por %p32, %p33
    %p35 = scmp.ne.s32.totalorder %s24, %s25
    %p36 = scmp.eq.s32.totalorder %s16, 0
    %p37 = por %p35, %p36
    %p38 = scmp.ne.s32.totalorder %s24, %s25
    %p39 = scmp.eq.s32.totalorder %s17, 1
    %p40 = por %p38, %p39
    %p42 = scmp.ne.s32.totalorder %s25, %s41
    %p43 = scmp.eq.s32.totalorder %s17, 0
    %p44 = por %p42, %p43
    %s46 = sadd.s32 %s45, 1
    %p49 = scmp.eq.s32.totalorder %s11, 1
    %p50 = scmp.ne.s32.totalorder %s45, %s47
    %p51 = scmp.eq.s32.totalorder %s11, 0
    %p52 = por %p50, %p51
    %p53 = scmp.ne.s32.totalorder %s45, %s47
    %p54 = scmp.eq.s32.totalorder %s16, 1
    %p55 = por %p53, %p54
    %p56 = scmp.ne.s32.totalorder %s47, %s48
    %p57 = scmp.eq.s32.totalorder %s16, 0
    %p58 = por %p56, %p57
    %p59 = scmp.ne.s32.totalorder %s47, %s48
    %p60 = scmp.eq.s32.totalorder %s17, 1
    %p61 = por %p59, %p60
    %p63 = scmp.ne.s32.totalorder %s48, %s62
    %p64 = scmp.eq.s32.totalorder %s17, 0
    %p65 = por %p63, %p64
    %s67 = sadd.s32 %s66, 1
    %p70 = scmp.eq.s32.totalorder %s11, 1
    %p71 = scmp.ne.s32.totalorder %s66, %s68
    %p72 = scmp.eq.s32.totalorder %s11, 0
    %p73 = por %p71, %p72
    %p74 = scmp.ne.s32.totalorder %s66, %s68
    %p75 = scmp.eq.s32.totalorder %s16, 1
    %p76 = por %p74, %p75
    %p77 = scmp.ne.s32.totalorder %s68, %s69
    %p78 = scmp.eq.s32.totalorder %s16, 0
    %p79 = por %p77, %p78
    %p80 = scmp.ne.s32.totalorder %s68, %s69
    %p81 = scmp.eq.s32.totalorder %s17, 1
    %p82 = por %p80, %p81
    %p84 = scmp.ne.s32.totalorder %s69, %s83
    %p85 = scmp.eq.s32.totalorder %s17, 0
    %p86 = por %p84, %p85
    %s88 = sadd.s32 %s87, 1
    %p91 = scmp.eq.s32.totalorder %s11, 1
    %p92 = scmp.ne.s32.totalorder %s87, %s89
    %p93 = scmp.eq.s32.totalorder %s11, 0
    %p94 = por %p92, %p93
    %p95 = scmp.ne.s32.totalorder %s87, %s89
    %p96 = scmp.eq.s32.totalorder %s16, 1
    %p97 = por %p95, %p96
    %p98 = scmp.ne.s32.totalorder %s89, %s90
    %p99 = scmp.eq.s32.totalorder %s16, 0
    %p100 = por %p98, %p99
    %p101 = scmp.ne.s32.totalorder %s89, %s90
    %p102 = scmp.eq.s32.totalorder %s17, 1
    %p103 = por %p101, %p102
    %p105 = scmp.ne.s32.totalorder %s90, %s104
    %p106 = scmp.eq.s32.totalorder %s17, 0
    %p107 = por %p105, %p106
    %s109 = sadd.s32 %s108, 1
    %p112 = scmp.eq.s32.totalorder %s11, 1
    %p113 = scmp.ne.s32.totalorder %s108, %s110
    %p114 = scmp.eq.s32.totalorder %s11, 0
    %p115 = por %p113, %p114
    %p116 = scmp.ne.s32.totalorder %s108, %s110
    %p117 = scmp.eq.s32.totalorder %s16, 1
    %p118 = por %p116, %p117
    %p119 = scmp.ne.s32.totalorder %s110, %s111
    %p120 = scmp.eq.s32.totalorder %s16, 0
    %p121 = por %p119, %p120
    %p122 = scmp.ne.s32.totalorder %s110, %s111
    %p123 = scmp.eq.s32.totalorder %s17, 1
    %p124 = por %p122, %p123
    %p126 = scmp.ne.s32.totalorder %s111, %s125
    %p127 = scmp.eq.s32.totalorder %s17, 0
    %p128 = por %p126, %p127
    %s129 = ssub.s32 %s11, %s18
    %p130 = scmp.eq.s32.totalorder %s129, 0
    %s132 = sadd.s32 %s131, 1
    %s133 = scalar_select %p130, %s131, %s132
    %p136 = pneg %p130
    %p137 = scmp.eq.s32.totalorder %s11, 1
    %p138 = por %p136, %p137
    %p139 = scmp.ne.s32.totalorder %s131, %s134
    %p140 = scmp.eq.s32.totalorder %s11, 0
    %p141 = por %p139, %p140
    %p142 = scmp.ne.s32.totalorder %s131, %s134
    %p143 = scmp.eq.s32.totalorder %s16, 1
    %p144 = por %p142, %p143
    %p145 = scmp.ne.s32.totalorder %s134, %s135
    %p146 = scmp.eq.s32.totalorder %s16, 0
    %p147 = por %p145, %p146
    %p148 = scmp.ne.s32.totalorder %s134, %s135
    %p149 = scmp.eq.s32.totalorder %s17, 1
    %p150 = por %p148, %p149
    %p152 = scmp.ne.s32.totalorder %s135, %s151
    %p153 = scmp.eq.s32.totalorder %s17, 0
    %p154 = por %p152, %p153
    %p155 = scmp.le.s32.totalorder 1, %s11
    %p156 = scmp.lt.s32.totalorder %s11, 3
    %p157 = pnand %p155, %p156
    %p158 = pneg %p157
    // Predicated region
    $region9: #{feature_extractor_forward.1} parent=5 // pred_check
      _
    $region10: #{feature_extractor_forward.1} parent=5 // pred_check_branch
      %160 = sbr.rel (%p157) target = $region12
    $region11: #{feature_extractor_forward.1} parent=5 // pred_region
      %s161 = ssub.s32 %s11, 1
      // Predicated region
      $region13: #{feature_extractor_forward.1} parent=11 // pred_check
        %p162 = pneg %p58
      $region14: #{feature_extractor_forward.1} parent=11 // pred_check_branch
        %164 = sbr.rel (%p162) target = $region16
      $region15: #{feature_extractor_forward.1} parent=11 // pred_region
        _
      $region16: #{feature_extractor_forward.1} parent=11 // pred_fallthru
        _
      // Predicated region
      $region17: #{feature_extractor_forward.1} parent=11 // pred_check
        %p165 = pneg %p79
      $region18: #{feature_extractor_forward.1} parent=11 // pred_check_branch
        %167 = sbr.rel (%p165) target = $region20
      $region19: #{feature_extractor_forward.1} parent=11 // pred_region
        _
      $region20: #{feature_extractor_forward.1} parent=11 // pred_fallthru
        _
      // Predicated region
      $region21: #{feature_extractor_forward.1} parent=11 // pred_check
        %p168 = pneg %p100
      $region22: #{feature_extractor_forward.1} parent=11 // pred_check_branch
        %170 = sbr.rel (%p168) target = $region24
      $region23: #{feature_extractor_forward.1} parent=11 // pred_region
        _
      $region24: #{feature_extractor_forward.1} parent=11 // pred_fallthru
        _
      // Predicated region
      $region25: #{feature_extractor_forward.1} parent=11 // pred_check
        %p171 = pneg %p121
      $region26: #{feature_extractor_forward.1} parent=11 // pred_check_branch
        %173 = sbr.rel (%p171) target = $region28
      $region27: #{feature_extractor_forward.1} parent=11 // pred_region
        _
      $region28: #{feature_extractor_forward.1} parent=11 // pred_fallthru
        _
    $region12: #{feature_extractor_forward.1} parent=5 // pred_fallthru
      _
    %p174 = scmp.lt.s32.totalorder %s11, 2
    // Predicated region
    $region29: #{feature_extractor_forward.1} parent=5 // pred_check
      %p175 = pneg %p174
    $region30: #{feature_extractor_forward.1} parent=5 // pred_check_branch
      %177 = sbr.rel (%p175) target = $region32
    $region31: #{feature_extractor_forward.1} parent=5 // pred_region
      // Predicated region
      $region33: #{feature_extractor_forward.1} parent=31 // pred_check
        %p178 = pneg %p31
      $region34: #{feature_extractor_forward.1} parent=31 // pred_check_branch
        %180 = sbr.rel (%p178) target = $region36
      $region35: #{feature_extractor_forward.1} parent=31 // pred_region
        %s181 = smul.u32 80, %s11
        %p182 = scmp.lt.s32.totalorder %s181, 159
        %s183 = scalar_select %p182, %s181, 159
        %s184 = smul.addr %s183, 4
        %s185 = scalar_lea.vmem %s0, %s184
        %s186 = smul.u32 80, %s11
      $region36: #{feature_extractor_forward.1} parent=31 // pred_fallthru
        _
    $region32: #{feature_extractor_forward.1} parent=5 // pred_fallthru
      _
    %p187 = scmp.le.s32.totalorder 1, %s11
    %p188 = scmp.lt.s32.totalorder %s11, 3
    %p189 = pnand %p187, %p188
    %p190 = pneg %p189
    // Predicated region
    $region37: #{feature_extractor_forward.1} parent=5 // pred_check
      _
    $region38: #{feature_extractor_forward.1} parent=5 // pred_check_branch
      %192 = sbr.rel (%p189) target = $region40
    $region39: #{feature_extractor_forward.1} parent=5 // pred_region
      %s193 = ssub.s32 %s11, 1
      %s194 = smul.u32 80, %s16
      %p195 = scmp.lt.s32.totalorder %s194, 159
      %s196 = scalar_select %p195, %s194, 159
      %s197 = smul.addr %s196, 4
      %s198 = scalar_lea.vmem %s0, %s197
      %p199 = pneg %p37
      %p200 = pneg %p34
      %p201 = pneg %p58
      %p202 = pneg %p55
      %p203 = pneg %p79
      %p204 = pneg %p76
      %p205 = pneg %p100
      %p206 = pneg %p97
      %p207 = pneg %p121
      %p208 = pneg %p118
      %p209 = pneg %p147
      %p210 = pneg %p144
      %s211 = smul.u32 5, %s16
      %p212 = scmp.lt.s32.totalorder %s211, 9
      %s213 = scalar_select %p212, %s211, 9
      %s214 = smul.addr %s213, 8
      %s215 = scalar_lea.vmem %s5, %s214
      %s216 = smul.u32 80, %s16
      %p217 = scmp.lt.s32.totalorder %s216, 159
      %s218 = scalar_select %p217, %s216, 159
      %s219 = smul.addr %s218, 4
      %s220 = scalar_lea.vmem %s0, %s219
      %s221 = smul.u32 80, %s16
      %s222 = smul.u32 5, %s16
      %p223 = scmp.lt.s32.totalorder %s222, 9
      %s224 = scalar_select %p223, %s222, 9
      %s225 = smul.addr %s224, 8
      %s226 = scalar_lea.vmem %s5, %s225
      %s227 = smul.u32 5, %s16
      %v229 = vld [vmem:[%s220] sm:$0xf]
      %v230 = vld [vmem:[%s220 + $0x4] sm:$0xf]
      %v231 = vld [vmem:[%s220 + $0x8] sm:$0xf]
      %v232 = vld [vmem:[%s220 + $0xc] sm:$0xf]
      %v233 = vld [vmem:[%s220 + $0x10] sm:$0xf]
      %v234 = vld [vmem:[%s220 + $0x14] sm:$0xf]
      %v235 = vld [vmem:[%s220 + $0x18] sm:$0xf]
      %v236 = vld [vmem:[%s220 + $0x1c] sm:$0xf]
      %v237 = vld [vmem:[%s220 + $0x20] sm:$0xf]
      %v238 = vld [vmem:[%s220 + $0x24] sm:$0xf]
      %v239 = vld [vmem:[%s220 + $0x28] sm:$0xf]
      %v240 = vld [vmem:[%s220 + $0x2c] sm:$0xf]
      %v241 = vld [vmem:[%s220 + $0x30] sm:$0xf]
      %v242 = vld [vmem:[%s220 + $0x34] sm:$0xf]
      %v243 = vld [vmem:[%s220 + $0x38] sm:$0xf]
      %v244 = vld [vmem:[%s220 + $0x3c] sm:$0xf]
      %v245 = vld [vmem:[%s220 + $0x40] sm:$0xf]
      %v246 = vld [vmem:[%s220 + $0x44] sm:$0xf]
      %v247 = vld [vmem:[%s220 + $0x48] sm:$0xf]
      %v248 = vld [vmem:[%s220 + $0x4c] sm:$0xf]
      %v249 = vld [vmem:[%s220 + $0x50] sm:$0xf]
      %v250 = vld [vmem:[%s220 + $0x54] sm:$0xf]
      %v251 = vld [vmem:[%s220 + $0x58] sm:$0xf]
      %v252 = vld [vmem:[%s220 + $0x5c] sm:$0xf]
      %v253 = vld [vmem:[%s220 + $0x60] sm:$0xf]
      %v254 = vld [vmem:[%s220 + $0x64] sm:$0xf]
      %v255 = vld [vmem:[%s220 + $0x68] sm:$0xf]
      %v256 = vld [vmem:[%s220 + $0x6c] sm:$0xf]
      %v257 = vld [vmem:[%s220 + $0x70] sm:$0xf]
      %v258 = vld [vmem:[%s220 + $0x74] sm:$0xf]
      %v259 = vld [vmem:[%s220 + $0x78] sm:$0xf]
      %v260 = vld [vmem:[%s220 + $0x7c] sm:$0xf]
      %v261 = vld [vmem:[%s220 + $0x80] sm:$0xf]
      %v262 = vld [vmem:[%s220 + $0x84] sm:$0xf]
      %v263 = vld [vmem:[%s220 + $0x88] sm:$0xf]
      %v264 = vld [vmem:[%s220 + $0x8c] sm:$0xf]
      %v265 = vld [vmem:[%s220 + $0x90] sm:$0xf]
      %v266 = vld [vmem:[%s220 + $0x94] sm:$0xf]
      %v267 = vld [vmem:[%s220 + $0x98] sm:$0xf]
      %v268 = vld [vmem:[%s220 + $0x9c] sm:$0xf]
      %v269 = vld [vmem:[%s220 + $0xa0] sm:$0xf]
      %v270 = vld [vmem:[%s220 + $0xa4] sm:$0xf]
      %v271 = vld [vmem:[%s220 + $0xa8] sm:$0xf]
      %v272 = vld [vmem:[%s220 + $0xac] sm:$0xf]
      %v273 = vld [vmem:[%s220 + $0xb0] sm:$0xf]
      %v274 = vld [vmem:[%s220 + $0xb4] sm:$0xf]
      %v275 = vld [vmem:[%s220 + $0xb8] sm:$0xf]
      %v276 = vld [vmem:[%s220 + $0xbc] sm:$0xf]
      %v277 = vld [vmem:[%s220 + $0xc0] sm:$0xf]
      %v278 = vld [vmem:[%s220 + $0xc4] sm:$0xf]
      %v279 = vld [vmem:[%s220 + $0xc8] sm:$0xf]
      %v280 = vld [vmem:[%s220 + $0xcc] sm:$0xf]
      %v281 = vld [vmem:[%s220 + $0xd0] sm:$0xf]
      %v282 = vld [vmem:[%s220 + $0xd4] sm:$0xf]
      %v283 = vld [vmem:[%s220 + $0xd8] sm:$0xf]
      %v284 = vld [vmem:[%s220 + $0xdc] sm:$0xf]
      %v285 = vld [vmem:[%s220 + $0xe0] sm:$0xf]
      %v286 = vld [vmem:[%s220 + $0xe4] sm:$0xf]
      %v287 = vld [vmem:[%s220 + $0xe8] sm:$0xf]
      %v288 = vld [vmem:[%s220 + $0xec] sm:$0xf]
      %v289 = vld [vmem:[%s220 + $0xf0] sm:$0xf]
      %v290 = vld [vmem:[%s220 + $0xf4] sm:$0xf]
      %v291 = vld [vmem:[%s220 + $0xf8] sm:$0xf]
      %v292 = vld [vmem:[%s220 + $0xfc] sm:$0xf]
      %v293 = vld [vmem:[%s220 + $0x100] sm:$0xf]
      %v294 = vld [vmem:[%s220 + $0x104] sm:$0xf]
      %v295 = vld [vmem:[%s220 + $0x108] sm:$0xf]
      %v296 = vld [vmem:[%s220 + $0x10c] sm:$0xf]
      %v297 = vld [vmem:[%s220 + $0x110] sm:$0xf]
      %v298 = vld [vmem:[%s220 + $0x114] sm:$0xf]
      %v299 = vld [vmem:[%s220 + $0x118] sm:$0xf]
      %v300 = vld [vmem:[%s220 + $0x11c] sm:$0xf]
      %v301 = vld [vmem:[%s220 + $0x120] sm:$0xf]
      %v302 = vld [vmem:[%s220 + $0x124] sm:$0xf]
      %v303 = vld [vmem:[%s220 + $0x128] sm:$0xf]
      %v304 = vld [vmem:[%s220 + $0x12c] sm:$0xf]
      %v305 = vld [vmem:[%s220 + $0x130] sm:$0xf]
      %v306 = vld [vmem:[%s220 + $0x134] sm:$0xf]
      %v307 = vld [vmem:[%s220 + $0x138] sm:$0xf]
      %v308 = vld [vmem:[%s220 + $0x13c] sm:$0xf]
      %v309 = vld [vmem:[%s1] sm:$0xf]
      %v310 = vld [vmem:[%s1 + $0x4] sm:$0xf]
      %v311 = vld [vmem:[%s1 + $0x8] sm:$0xf]
      %v312 = vld [vmem:[%s1 + $0xc] sm:$0xf]
      %v313 = vld [vmem:[%s1 + $0x10] sm:$0xf]
      %v314 = vld [vmem:[%s1 + $0x14] sm:$0xf]
      %v315 = vld [vmem:[%s2] sm:$0x1]
      %v317 = vlaneseq
      %v318 = vshrl.u32 %v317, 7
      %v319 = vsub.s32 0, %v318
      %v320 = vrot.slane %v315, %v319
      %v402 = vunpack.c.l.b16 %v229
      %v403 = vunpack.c.l.b16 %v230
      %v404 = vunpack.c.l.b16 %v231
      %v405 = vunpack.c.l.b16 %v232
      %v406 = vunpack.c.l.b16 %v233
      %v407 = vunpack.c.l.b16 %v234
      %v408 = vunpack.c.l.b16 %v235
      %v409 = vunpack.c.l.b16 %v236
      %v410 = vunpack.c.l.b16 %v237
      %v411 = vunpack.c.l.b16 %v238
      %v412 = vunpack.c.l.b16 %v239
      %v413 = vunpack.c.l.b16 %v240
      %v414 = vunpack.c.l.b16 %v241
      %v415 = vunpack.c.l.b16 %v242
      %v416 = vunpack.c.l.b16 %v243
      %v417 = vunpack.c.l.b16 %v244
      %v418 = vunpack.c.l.b16 %v245
      %v419 = vunpack.c.l.b16 %v246
      %v420 = vunpack.c.l.b16 %v247
      %v421 = vunpack.c.l.b16 %v248
      %v422 = vunpack.c.l.b16 %v249
      %v423 = vunpack.c.l.b16 %v250
      %v424 = vunpack.c.l.b16 %v251
      %v425 = vunpack.c.l.b16 %v252
      %v426 = vunpack.c.l.b16 %v253
      %v427 = vunpack.c.l.b16 %v254
      %v428 = vunpack.c.l.b16 %v255
      %v429 = vunpack.c.l.b16 %v256
      %v430 = vunpack.c.l.b16 %v257
      %v431 = vunpack.c.l.b16 %v258
      %v432 = vunpack.c.l.b16 %v259
      %v433 = vunpack.c.l.b16 %v260
      %v434 = vunpack.c.l.b16 %v261
      %v435 = vunpack.c.l.b16 %v262
      %v436 = vunpack.c.l.b16 %v263
      %v437 = vunpack.c.l.b16 %v264
      %v438 = vunpack.c.l.b16 %v265
      %v439 = vunpack.c.l.b16 %v266
      %v440 = vunpack.c.l.b16 %v267
      %v441 = vunpack.c.l.b16 %v268
      %v442 = vunpack.c.l.b16 %v269
      %v443 = vunpack.c.l.b16 %v270
      %v444 = vunpack.c.l.b16 %v271
      %v445 = vunpack.c.l.b16 %v272
      %v446 = vunpack.c.l.b16 %v273
      %v447 = vunpack.c.l.b16 %v274
      %v448 = vunpack.c.l.b16 %v275
      %v449 = vunpack.c.l.b16 %v276
      %v450 = vunpack.c.l.b16 %v277
      %v451 = vunpack.c.l.b16 %v278
      %v452 = vunpack.c.l.b16 %v279
      %v453 = vunpack.c.l.b16 %v280
      %v454 = vunpack.c.l.b16 %v281
      %v455 = vunpack.c.l.b16 %v282
      %v456 = vunpack.c.l.b16 %v283
      %v457 = vunpack.c.l.b16 %v284
      %v458 = vunpack.c.l.b16 %v285
      %v459 = vunpack.c.l.b16 %v286
      %v460 = vunpack.c.l.b16 %v287
      %v461 = vunpack.c.l.b16 %v288
      %v462 = vunpack.c.l.b16 %v289
      %v463 = vunpack.c.l.b16 %v290
      %v464 = vunpack.c.l.b16 %v291
      %v465 = vunpack.c.l.b16 %v292
      %v466 = vunpack.c.l.b16 %v293
      %v467 = vunpack.c.l.b16 %v294
      %v468 = vunpack.c.l.b16 %v295
      %v469 = vunpack.c.l.b16 %v296
      %v470 = vunpack.c.l.b16 %v297
      %v471 = vunpack.c.l.b16 %v298
      %v472 = vunpack.c.l.b16 %v299
      %v473 = vunpack.c.l.b16 %v300
      %v474 = vunpack.c.l.b16 %v301
      %v475 = vunpack.c.l.b16 %v302
      %v476 = vunpack.c.l.b16 %v303
      %v477 = vunpack.c.l.b16 %v304
      %v478 = vunpack.c.l.b16 %v305
      %v479 = vunpack.c.l.b16 %v306
      %v480 = vunpack.c.l.b16 %v307
      %v481 = vunpack.c.l.b16 %v308
      %v482 = vpack.c.b16 %v403, %v402
      %v483 = vpack.c.b16 %v405, %v404
      %v484 = vpack.c.b16 %v407, %v406
      %v485 = vpack.c.b16 %v409, %v408
      %v486 = vpack.c.b16 %v411, %v410
      %v487 = vpack.c.b16 %v413, %v412
      %v488 = vpack.c.b16 %v415, %v414
      %v489 = vpack.c.b16 %v417, %v416
      %v490 = vpack.c.b16 %v419, %v418
      %v491 = vpack.c.b16 %v421, %v420
      %v492 = vpack.c.b16 %v423, %v422
      %v493 = vpack.c.b16 %v425, %v424
      %v494 = vpack.c.b16 %v427, %v426
      %v495 = vpack.c.b16 %v429, %v428
      %v496 = vpack.c.b16 %v431, %v430
      %v497 = vpack.c.b16 %v433, %v432
      %v498 = vpack.c.b16 %v435, %v434
      %v499 = vpack.c.b16 %v437, %v436
      %v500 = vpack.c.b16 %v439, %v438
      %v501 = vpack.c.b16 %v441, %v440
      %v502 = vpack.c.b16 %v443, %v442
      %v503 = vpack.c.b16 %v445, %v444
      %v504 = vpack.c.b16 %v447, %v446
      %v505 = vpack.c.b16 %v449, %v448
      %v506 = vpack.c.b16 %v451, %v450
      %v507 = vpack.c.b16 %v453, %v452
      %v508 = vpack.c.b16 %v455, %v454
      %v509 = vpack.c.b16 %v457, %v456
      %v510 = vpack.c.b16 %v459, %v458
      %v511 = vpack.c.b16 %v461, %v460
      %v512 = vpack.c.b16 %v463, %v462
      %v513 = vpack.c.b16 %v465, %v464
      %v514 = vpack.c.b16 %v467, %v466
      %v515 = vpack.c.b16 %v469, %v468
      %v516 = vpack.c.b16 %v471, %v470
      %v517 = vpack.c.b16 %v473, %v472
      %v518 = vpack.c.b16 %v475, %v474
      %v519 = vpack.c.b16 %v477, %v476
      %v520 = vpack.c.b16 %v479, %v478
      %v521 = vpack.c.b16 %v481, %v480
      %v528 = vunpack.c.l.b16 %v309
      %v529 = vunpack.c.l.b16 %v310
      %v530 = vunpack.c.l.b16 %v311
      %v531 = vunpack.c.l.b16 %v312
      %v532 = vunpack.c.l.b16 %v313
      %v533 = vunpack.c.l.b16 %v314
      %v534 = vpack.c.b16 %v529, %v528
      %v535 = vpack.c.b16 %v531, %v530
      %v536 = vpack.c.b16 %v533, %v532
      %vm540 = vcmask 392192
      %v542 = vsel %vm540, %v482, 0
      %v545 = vsel %vm540, %v483, 0
      %v548 = vsel %vm540, %v484, 0
      %v551 = vsel %vm540, %v485, 0
      %v554 = vsel %vm540, %v486, 0
      %v557 = vsel %vm540, %v487, 0
      %v560 = vsel %vm540, %v488, 0
      %v563 = vsel %vm540, %v489, 0
      %v566 = vsel %vm540, %v490, 0
      %v569 = vsel %vm540, %v491, 0
      %v572 = vsel %vm540, %v492, 0
      %v575 = vsel %vm540, %v493, 0
      %v578 = vsel %vm540, %v494, 0
      %v581 = vsel %vm540, %v495, 0
      %v584 = vsel %vm540, %v496, 0
      %v587 = vsel %vm540, %v497, 0
      %v590 = vsel %vm540, %v498, 0
      %v593 = vsel %vm540, %v499, 0
      %v596 = vsel %vm540, %v500, 0
      %v599 = vsel %vm540, %v501, 0
      %v602 = vsel %vm540, %v502, 0
      %v605 = vsel %vm540, %v503, 0
      %v608 = vsel %vm540, %v504, 0
      %v611 = vsel %vm540, %v505, 0
      %v614 = vsel %vm540, %v506, 0
      %v617 = vsel %vm540, %v507, 0
      %v620 = vsel %vm540, %v508, 0
      %v623 = vsel %vm540, %v509, 0
      %v626 = vsel %vm540, %v510, 0
      %v629 = vsel %vm540, %v511, 0
      %v632 = vsel %vm540, %v512, 0
      %v635 = vsel %vm540, %v513, 0
      %v638 = vsel %vm540, %v514, 0
      %v641 = vsel %vm540, %v515, 0
      %v644 = vsel %vm540, %v516, 0
      %v647 = vsel %vm540, %v517, 0
      %v650 = vsel %vm540, %v518, 0
      %v653 = vsel %vm540, %v519, 0
      %v656 = vsel %vm540, %v520, 0
      %v659 = vsel %vm540, %v521, 0
      %661 = vmatprep.subr.bf16.mxu0 0
      %662 = vmatpush1.bf16.msra.mxu0 0
      %663 = vmatprep.subr.bf16.mxu0 0
      %664 = vmatpush1.bf16.msra.mxu0 0
      %665 = vmatprep.subr.bf16.mxu0 0
      %666 = vmatpush1.bf16.msra.mxu0 0
      %667 = vmatprep.subr.bf16.mxu0 0
      %668 = vmatpush1.bf16.msra.mxu0 0
      %669 = vmatprep.subr.bf16.mxu0 0
      %670 = vmatpush1.bf16.msra.mxu0 0
      %671 = vmatprep.subr.bf16.mxu0 0
      %672 = vmatpush1.bf16.msra.mxu0 %v536
      %673 = vmatprep.subr.bf16.mxu0 0
      %674 = vmatpush1.bf16.msra.mxu0 %v535
      %675 = vmatprep.subr.bf16.mxu0 0
      %676 = vmatpush1.bf16.msra.mxu0 %v534
      %677 = vmatprep.subr.bf16.mxu0 0
      %678 = vmatpush2.bf16.msra.mxu0 0
      %679 = vmatprep.subr.bf16.mxu0 0
      %680 = vmatpush2.bf16.msra.mxu0 0
      %681 = vmatprep.subr.bf16.mxu0 0
      %682 = vmatpush2.bf16.msra.mxu0 0
      %683 = vmatprep.subr.bf16.mxu0 0
      %684 = vmatpush2.bf16.msra.mxu0 0
      %685 = vmatprep.subr.bf16.mxu0 0
      %686 = vmatpush2.bf16.msra.mxu0 0
      %687 = vmatprep.subr.bf16.mxu0 0
      %688 = vmatpush2.bf16.msra.mxu0 0
      %689 = vmatprep.subr.bf16.mxu0 0
      %690 = vmatpush2.bf16.msra.mxu0 0
      %691 = vmatprep.subr.bf16.mxu0 0
      %692 = vmatpush2.bf16.msra.mxu0 0
      %693 = vmatprep.mubr.bf16.mxu0 0
      %694 = vmatmul.mubr.bf16.gmra.mxu0 %v542
      %v695 = vpop.f32.mrf.mxu0
      %v696 = vadd.f32 %v320, %v695
      %v697 = vpop.f32.mrf.mxu0
      %v698 = vpop.f32.mrf.mxu0
      %v699 = vadd.f32 %v320, %v698
      %v700 = vpop.f32.mrf.mxu0
      %701 = vmatprep.mubr.bf16.mxu0 0
      %702 = vmatmul.mubr.bf16.gmra.mxu0 %v545
      %v703 = vpop.f32.mrf.mxu0
      %v704 = vadd.f32 %v320, %v703
      %v705 = vpop.f32.mrf.mxu0
      %v706 = vpop.f32.mrf.mxu0
      %v707 = vadd.f32 %v320, %v706
      %v708 = vpop.f32.mrf.mxu0
      %709 = vmatprep.mubr.bf16.mxu0 0
      %710 = vmatmul.mubr.bf16.gmra.mxu0 %v548
      %v711 = vpop.f32.mrf.mxu0
      %v712 = vadd.f32 %v320, %v711
      %v713 = vpop.f32.mrf.mxu0
      %v714 = vpop.f32.mrf.mxu0
      %v715 = vadd.f32 %v320, %v714
      %v716 = vpop.f32.mrf.mxu0
      %717 = vmatprep.mubr.bf16.mxu0 0
      %718 = vmatmul.mubr.bf16.gmra.mxu0 %v551
      %v719 = vpop.f32.mrf.mxu0
      %v720 = vadd.f32 %v320, %v719
      %v721 = vpop.f32.mrf.mxu0
      %v722 = vpop.f32.mrf.mxu0
      %v723 = vadd.f32 %v320, %v722
      %v724 = vpop.f32.mrf.mxu0
      %725 = vmatprep.mubr.bf16.mxu0 0
      %726 = vmatmul.mubr.bf16.gmra.mxu0 %v554
      %v727 = vpop.f32.mrf.mxu0
      %v728 = vadd.f32 %v320, %v727
      %v729 = vpop.f32.mrf.mxu0
      %v730 = vpop.f32.mrf.mxu0
      %v731 = vadd.f32 %v320, %v730
      %v732 = vpop.f32.mrf.mxu0
      %733 = vmatprep.mubr.bf16.mxu0 0
      %734 = vmatmul.mubr.bf16.gmra.mxu0 %v557
      %v735 = vpop.f32.mrf.mxu0
      %v736 = vadd.f32 %v320, %v735
      %v737 = vpop.f32.mrf.mxu0
      %v738 = vpop.f32.mrf.mxu0
      %v739 = vadd.f32 %v320, %v738
      %v740 = vpop.f32.mrf.mxu0
      %741 = vmatprep.mubr.bf16.mxu0 0
      %742 = vmatmul.mubr.bf16.gmra.mxu0 %v560
      %v743 = vpop.f32.mrf.mxu0
      %v744 = vadd.f32 %v320, %v743
      %v745 = vpop.f32.mrf.mxu0
      %v746 = vpop.f32.mrf.mxu0
      %v747 = vadd.f32 %v320, %v746
      %v748 = vpop.f32.mrf.mxu0
      %749 = vmatprep.mubr.bf16.mxu0 0
      %750 = vmatmul.mubr.bf16.gmra.mxu0 %v563
      %v751 = vpop.f32.mrf.mxu0
      %v752 = vadd.f32 %v320, %v751
      %v753 = vpop.f32.mrf.mxu0
      %v754 = vpop.f32.mrf.mxu0
      %v755 = vadd.f32 %v320, %v754
      %v756 = vpop.f32.mrf.mxu0
      %757 = vmatprep.mubr.bf16.mxu0 0
      %758 = vmatmul.mubr.bf16.gmra.mxu0 %v566
      %v759 = vpop.f32.mrf.mxu0
      %v760 = vadd.f32 %v320, %v759
      %v761 = vpop.f32.mrf.mxu0
      %v762 = vpop.f32.mrf.mxu0
      %v763 = vadd.f32 %v320, %v762
      %v764 = vpop.f32.mrf.mxu0
      %765 = vmatprep.mubr.bf16.mxu0 0
      %766 = vmatmul.mubr.bf16.gmra.mxu0 %v569
      %v767 = vpop.f32.mrf.mxu0
      %v768 = vadd.f32 %v320, %v767
      %v769 = vpop.f32.mrf.mxu0
      %v770 = vpop.f32.mrf.mxu0
      %v771 = vadd.f32 %v320, %v770
      %v772 = vpop.f32.mrf.mxu0
      %773 = vmatprep.mubr.bf16.mxu0 0
      %774 = vmatmul.mubr.bf16.gmra.mxu0 %v572
      %v775 = vpop.f32.mrf.mxu0
      %v776 = vadd.f32 %v320, %v775
      %v777 = vpop.f32.mrf.mxu0
      %v778 = vpop.f32.mrf.mxu0
      %v779 = vadd.f32 %v320, %v778
      %v780 = vpop.f32.mrf.mxu0
      %781 = vmatprep.mubr.bf16.mxu0 0
      %782 = vmatmul.mubr.bf16.gmra.mxu0 %v575
      %v783 = vpop.f32.mrf.mxu0
      %v784 = vadd.f32 %v320, %v783
      %v785 = vpop.f32.mrf.mxu0
      %v786 = vpop.f32.mrf.mxu0
      %v787 = vadd.f32 %v320, %v786
      %v788 = vpop.f32.mrf.mxu0
      %789 = vmatprep.mubr.bf16.mxu0 0
      %790 = vmatmul.mubr.bf16.gmra.mxu0 %v578
      %v791 = vpop.f32.mrf.mxu0
      %v792 = vadd.f32 %v320, %v791
      %v793 = vpop.f32.mrf.mxu0
      %v794 = vpop.f32.mrf.mxu0
      %v795 = vadd.f32 %v320, %v794
      %v796 = vpop.f32.mrf.mxu0
      %797 = vmatprep.mubr.bf16.mxu0 0
      %798 = vmatmul.mubr.bf16.gmra.mxu0 %v581
      %v799 = vpop.f32.mrf.mxu0
      %v800 = vadd.f32 %v320, %v799
      %v801 = vpop.f32.mrf.mxu0
      %v802 = vpop.f32.mrf.mxu0
      %v803 = vadd.f32 %v320, %v802
      %v804 = vpop.f32.mrf.mxu0
      %805 = vmatprep.mubr.bf16.mxu0 0
      %806 = vmatmul.mubr.bf16.gmra.mxu0 %v584
      %v807 = vpop.f32.mrf.mxu0
      %v808 = vadd.f32 %v320, %v807
      %v809 = vpop.f32.mrf.mxu0
      %v810 = vpop.f32.mrf.mxu0
      %v811 = vadd.f32 %v320, %v810
      %v812 = vpop.f32.mrf.mxu0
      %813 = vmatprep.mubr.bf16.mxu0 0
      %814 = vmatmul.mubr.bf16.gmra.mxu0 %v587
      %v815 = vpop.f32.mrf.mxu0
      %v816 = vadd.f32 %v320, %v815
      %v817 = vpop.f32.mrf.mxu0
      %v818 = vpop.f32.mrf.mxu0
      %v819 = vadd.f32 %v320, %v818
      %v820 = vpop.f32.mrf.mxu0
      %821 = vmatprep.mubr.bf16.mxu0 0
      %822 = vmatmul.mubr.bf16.gmra.mxu0 %v590
      %v823 = vpop.f32.mrf.mxu0
      %v824 = vadd.f32 %v320, %v823
      %v825 = vpop.f32.mrf.mxu0
      %v826 = vpop.f32.mrf.mxu0
      %v827 = vadd.f32 %v320, %v826
      %v828 = vpop.f32.mrf.mxu0
      %829 = vmatprep.mubr.bf16.mxu0 0
      %830 = vmatmul.mubr.bf16.gmra.mxu0 %v593
      %v831 = vpop.f32.mrf.mxu0
      %v832 = vadd.f32 %v320, %v831
      %v833 = vpop.f32.mrf.mxu0
      %v834 = vpop.f32.mrf.mxu0
      %v835 = vadd.f32 %v320, %v834
      %v836 = vpop.f32.mrf.mxu0
      %837 = vmatprep.mubr.bf16.mxu0 0
      %838 = vmatmul.mubr.bf16.gmra.mxu0 %v596
      %v839 = vpop.f32.mrf.mxu0
      %v840 = vadd.f32 %v320, %v839
      %v841 = vpop.f32.mrf.mxu0
      %v842 = vpop.f32.mrf.mxu0
      %v843 = vadd.f32 %v320, %v842
      %v844 = vpop.f32.mrf.mxu0
      %845 = vmatprep.mubr.bf16.mxu0 0
      %846 = vmatmul.mubr.bf16.gmra.mxu0 %v599
      %v847 = vpop.f32.mrf.mxu0
      %v848 = vadd.f32 %v320, %v847
      %v849 = vpop.f32.mrf.mxu0
      %v850 = vpop.f32.mrf.mxu0
      %v851 = vadd.f32 %v320, %v850
      %v852 = vpop.f32.mrf.mxu0
      %853 = vmatprep.mubr.bf16.mxu0 0
      %854 = vmatmul.mubr.bf16.gmra.mxu0 %v602
      %v855 = vpop.f32.mrf.mxu0
      %v856 = vadd.f32 %v320, %v855
      %v857 = vpop.f32.mrf.mxu0
      %v858 = vpop.f32.mrf.mxu0
      %v859 = vadd.f32 %v320, %v858
      %v860 = vpop.f32.mrf.mxu0
      %861 = vmatprep.mubr.bf16.mxu0 0
      %862 = vmatmul.mubr.bf16.gmra.mxu0 %v605
      %v863 = vpop.f32.mrf.mxu0
      %v864 = vadd.f32 %v320, %v863
      %v865 = vpop.f32.mrf.mxu0
      %v866 = vpop.f32.mrf.mxu0
      %v867 = vadd.f32 %v320, %v866
      %v868 = vpop.f32.mrf.mxu0
      %869 = vmatprep.mubr.bf16.mxu0 0
      %870 = vmatmul.mubr.bf16.gmra.mxu0 %v608
      %v871 = vpop.f32.mrf.mxu0
      %v872 = vadd.f32 %v320, %v871
      %v873 = vpop.f32.mrf.mxu0
      %v874 = vpop.f32.mrf.mxu0
      %v875 = vadd.f32 %v320, %v874
      %v876 = vpop.f32.mrf.mxu0
      %877 = vmatprep.mubr.bf16.mxu0 0
      %878 = vmatmul.mubr.bf16.gmra.mxu0 %v611
      %v879 = vpop.f32.mrf.mxu0
      %v880 = vadd.f32 %v320, %v879
      %v881 = vpop.f32.mrf.mxu0
      %v882 = vpop.f32.mrf.mxu0
      %v883 = vadd.f32 %v320, %v882
      %v884 = vpop.f32.mrf.mxu0
      %885 = vmatprep.mubr.bf16.mxu0 0
      %886 = vmatmul.mubr.bf16.gmra.mxu0 %v614
      %v887 = vpop.f32.mrf.mxu0
      %v888 = vadd.f32 %v320, %v887
      %v889 = vpop.f32.mrf.mxu0
      %v890 = vpop.f32.mrf.mxu0
      %v891 = vadd.f32 %v320, %v890
      %v892 = vpop.f32.mrf.mxu0
      %893 = vmatprep.mubr.bf16.mxu0 0
      %894 = vmatmul.mubr.bf16.gmra.mxu0 %v617
      %v895 = vpop.f32.mrf.mxu0
      %v896 = vadd.f32 %v320, %v895
      %v897 = vpop.f32.mrf.mxu0
      %v898 = vpop.f32.mrf.mxu0
      %v899 = vadd.f32 %v320, %v898
      %v900 = vpop.f32.mrf.mxu0
      %901 = vmatprep.mubr.bf16.mxu0 0
      %902 = vmatmul.mubr.bf16.gmra.mxu0 %v620
      %v903 = vpop.f32.mrf.mxu0
      %v904 = vadd.f32 %v320, %v903
      %v905 = vpop.f32.mrf.mxu0
      %v906 = vpop.f32.mrf.mxu0
      %v907 = vadd.f32 %v320, %v906
      %v908 = vpop.f32.mrf.mxu0
      %909 = vmatprep.mubr.bf16.mxu0 0
      %910 = vmatmul.mubr.bf16.gmra.mxu0 %v623
      %v911 = vpop.f32.mrf.mxu0
      %v912 = vadd.f32 %v320, %v911
      %v913 = vpop.f32.mrf.mxu0
      %v914 = vpop.f32.mrf.mxu0
      %v915 = vadd.f32 %v320, %v914
      %v916 = vpop.f32.mrf.mxu0
      %917 = vmatprep.mubr.bf16.mxu0 0
      %918 = vmatmul.mubr.bf16.gmra.mxu0 %v626
      %v919 = vpop.f32.mrf.mxu0
      %v920 = vadd.f32 %v320, %v919
      %v921 = vpop.f32.mrf.mxu0
      %v922 = vpop.f32.mrf.mxu0
      %v923 = vadd.f32 %v320, %v922
      %v924 = vpop.f32.mrf.mxu0
      %925 = vmatprep.mubr.bf16.mxu0 0
      %926 = vmatmul.mubr.bf16.gmra.mxu0 %v629
      %v927 = vpop.f32.mrf.mxu0
      %v928 = vadd.f32 %v320, %v927
      %v929 = vpop.f32.mrf.mxu0
      %v930 = vpop.f32.mrf.mxu0
      %v931 = vadd.f32 %v320, %v930
      %v932 = vpop.f32.mrf.mxu0
      %933 = vmatprep.mubr.bf16.mxu0 0
      %934 = vmatmul.mubr.bf16.gmra.mxu0 %v632
      %v935 = vpop.f32.mrf.mxu0
      %v936 = vadd.f32 %v320, %v935
      %v937 = vpop.f32.mrf.mxu0
      %v938 = vpop.f32.mrf.mxu0
      %v939 = vadd.f32 %v320, %v938
      %v940 = vpop.f32.mrf.mxu0
      %941 = vmatprep.mubr.bf16.mxu0 0
      %942 = vmatmul.mubr.bf16.gmra.mxu0 %v635
      %v943 = vpop.f32.mrf.mxu0
      %v944 = vadd.f32 %v320, %v943
      %v945 = vpop.f32.mrf.mxu0
      %v946 = vpop.f32.mrf.mxu0
      %v947 = vadd.f32 %v320, %v946
      %v948 = vpop.f32.mrf.mxu0
      %949 = vmatprep.mubr.bf16.mxu0 0
      %950 = vmatmul.mubr.bf16.gmra.mxu0 %v638
      %v951 = vpop.f32.mrf.mxu0
      %v952 = vadd.f32 %v320, %v951
      %v953 = vpop.f32.mrf.mxu0
      %v954 = vpop.f32.mrf.mxu0
      %v955 = vadd.f32 %v320, %v954
      %v956 = vpop.f32.mrf.mxu0
      %957 = vmatprep.mubr.bf16.mxu0 0
      %958 = vmatmul.mubr.bf16.gmra.mxu0 %v641
      %v959 = vpop.f32.mrf.mxu0
      %v960 = vadd.f32 %v320, %v959
      %v961 = vpop.f32.mrf.mxu0
      %v962 = vpop.f32.mrf.mxu0
      %v963 = vadd.f32 %v320, %v962
      %v964 = vpop.f32.mrf.mxu0
      %965 = vmatprep.mubr.bf16.mxu0 0
      %966 = vmatmul.mubr.bf16.gmra.mxu0 %v644
      %v967 = vpop.f32.mrf.mxu0
      %v968 = vadd.f32 %v320, %v967
      %v969 = vpop.f32.mrf.mxu0
      %v970 = vpop.f32.mrf.mxu0
      %v971 = vadd.f32 %v320, %v970
      %v972 = vpop.f32.mrf.mxu0
      %973 = vmatprep.mubr.bf16.mxu0 0
      %974 = vmatmul.mubr.bf16.gmra.mxu0 %v647
      %v975 = vpop.f32.mrf.mxu0
      %v976 = vadd.f32 %v320, %v975
      %v977 = vpop.f32.mrf.mxu0
      %v978 = vpop.f32.mrf.mxu0
      %v979 = vadd.f32 %v320, %v978
      %v980 = vpop.f32.mrf.mxu0
      %981 = vmatprep.mubr.bf16.mxu0 0
      %982 = vmatmul.mubr.bf16.gmra.mxu0 %v650
      %v983 = vpop.f32.mrf.mxu0
      %v984 = vadd.f32 %v320, %v983
      %v985 = vpop.f32.mrf.mxu0
      %v986 = vpop.f32.mrf.mxu0
      %v987 = vadd.f32 %v320, %v986
      %v988 = vpop.f32.mrf.mxu0
      %989 = vmatprep.mubr.bf16.mxu0 0
      %990 = vmatmul.mubr.bf16.gmra.mxu0 %v653
      %v991 = vpop.f32.mrf.mxu0
      %v992 = vadd.f32 %v320, %v991
      %v993 = vpop.f32.mrf.mxu0
      %v994 = vpop.f32.mrf.mxu0
      %v995 = vadd.f32 %v320, %v994
      %v996 = vpop.f32.mrf.mxu0
      %997 = vmatprep.mubr.bf16.mxu0 0
      %998 = vmatmul.mubr.bf16.gmra.mxu0 %v656
      %v999 = vpop.f32.mrf.mxu0
      %v1000 = vadd.f32 %v320, %v999
      %v1001 = vpop.f32.mrf.mxu0
      %v1002 = vpop.f32.mrf.mxu0
      %v1003 = vadd.f32 %v320, %v1002
      %v1004 = vpop.f32.mrf.mxu0
      %1005 = vmatprep.mubr.bf16.mxu0 0
      %1006 = vmatmul.mubr.bf16.gmra.mxu0 %v659
      %v1007 = vpop.f32.mrf.mxu0
      %v1008 = vadd.f32 %v320, %v1007
      %v1009 = vpop.f32.mrf.mxu0
      %v1010 = vpop.f32.mrf.mxu0
      %v1011 = vadd.f32 %v320, %v1010
      %v1012 = vpop.f32.mrf.mxu0
      %1013 = vdwg.mxu0
      %v1014 = vmax.f32 %v696, 0.0
      %v1015 = vmax.f32 %v699, 0.0
      %v1016 = vmax.f32 %v704, 0.0
      %v1017 = vmax.f32 %v707, 0.0
      %v1018 = vmax.f32 %v712, 0.0
      %v1019 = vmax.f32 %v715, 0.0
      %v1020 = vmax.f32 %v720, 0.0
      %v1021 = vmax.f32 %v723, 0.0
      %v1022 = vmax.f32 %v728, 0.0
      %v1023 = vmax.f32 %v731, 0.0
      %v1024 = vmax.f32 %v736, 0.0
      %v1025 = vmax.f32 %v739, 0.0
      %v1026 = vmax.f32 %v744, 0.0
      %v1027 = vmax.f32 %v747, 0.0
      %v1028 = vmax.f32 %v752, 0.0
      %v1029 = vmax.f32 %v755, 0.0
      %v1030 = vmax.f32 %v760, 0.0
      %v1031 = vmax.f32 %v763, 0.0
      %v1032 = vmax.f32 %v768, 0.0
      %v1033 = vmax.f32 %v771, 0.0
      %v1034 = vmax.f32 %v776, 0.0
      %v1035 = vmax.f32 %v779, 0.0
      %v1036 = vmax.f32 %v784, 0.0
      %v1037 = vmax.f32 %v787, 0.0
      %v1038 = vmax.f32 %v792, 0.0
      %v1039 = vmax.f32 %v795, 0.0
      %v1040 = vmax.f32 %v800, 0.0
      %v1041 = vmax.f32 %v803, 0.0
      %v1042 = vmax.f32 %v808, 0.0
      %v1043 = vmax.f32 %v811, 0.0
      %v1044 = vmax.f32 %v816, 0.0
      %v1045 = vmax.f32 %v819, 0.0
      %v1046 = vmax.f32 %v824, 0.0
      %v1047 = vmax.f32 %v827, 0.0
      %v1048 = vmax.f32 %v832, 0.0
      %v1049 = vmax.f32 %v835, 0.0
      %v1050 = vmax.f32 %v840, 0.0
      %v1051 = vmax.f32 %v843, 0.0
      %v1052 = vmax.f32 %v848, 0.0
      %v1053 = vmax.f32 %v851, 0.0
      %v1054 = vmax.f32 %v856, 0.0
      %v1055 = vmax.f32 %v859, 0.0
      %v1056 = vmax.f32 %v864, 0.0
      %v1057 = vmax.f32 %v867, 0.0
      %v1058 = vmax.f32 %v872, 0.0
      %v1059 = vmax.f32 %v875, 0.0
      %v1060 = vmax.f32 %v880, 0.0
      %v1061 = vmax.f32 %v883, 0.0
      %v1062 = vmax.f32 %v888, 0.0
      %v1063 = vmax.f32 %v891, 0.0
      %v1064 = vmax.f32 %v896, 0.0
      %v1065 = vmax.f32 %v899, 0.0
      %v1066 = vmax.f32 %v904, 0.0
      %v1067 = vmax.f32 %v907, 0.0
      %v1068 = vmax.f32 %v912, 0.0
      %v1069 = vmax.f32 %v915, 0.0
      %v1070 = vmax.f32 %v920, 0.0
      %v1071 = vmax.f32 %v923, 0.0
      %v1072 = vmax.f32 %v928, 0.0
      %v1073 = vmax.f32 %v931, 0.0
      %v1074 = vmax.f32 %v936, 0.0
      %v1075 = vmax.f32 %v939, 0.0
      %v1076 = vmax.f32 %v944, 0.0
      %v1077 = vmax.f32 %v947, 0.0
      %v1078 = vmax.f32 %v952, 0.0
      %v1079 = vmax.f32 %v955, 0.0
      %v1080 = vmax.f32 %v960, 0.0
      %v1081 = vmax.f32 %v963, 0.0
      %v1082 = vmax.f32 %v968, 0.0
      %v1083 = vmax.f32 %v971, 0.0
      %v1084 = vmax.f32 %v976, 0.0
      %v1085 = vmax.f32 %v979, 0.0
      %v1086 = vmax.f32 %v984, 0.0
      %v1087 = vmax.f32 %v987, 0.0
      %v1088 = vmax.f32 %v992, 0.0
      %v1089 = vmax.f32 %v995, 0.0
      %v1090 = vmax.f32 %v1000, 0.0
      %v1091 = vmax.f32 %v1003, 0.0
      %v1092 = vmax.f32 %v1008, 0.0
      %v1093 = vmax.f32 %v1011, 0.0
      %v1094 = vadd.f32 %v1014, %v1015
      %v1095 = vrot.slane %v1094, 4
      %v1096 = vadd.f32 %v1094, %v1095
      %v1097 = vrot.slane %v1096, 2
      %v1098 = vadd.f32 %v1096, %v1097
      %v1099 = vrot.slane %v1098, 1
      %v1100 = vadd.f32 %v1098, %v1099
      %v1101 = vadd.f32 %v1016, %v1017
      %v1102 = vrot.slane %v1101, 4
      %v1103 = vadd.f32 %v1101, %v1102
      %v1104 = vrot.slane %v1103, 2
      %v1105 = vadd.f32 %v1103, %v1104
      %v1106 = vrot.slane %v1105, 1
      %v1107 = vadd.f32 %v1105, %v1106
      %v1108 = vadd.f32 %v1018, %v1019
      %v1109 = vrot.slane %v1108, 4
      %v1110 = vadd.f32 %v1108, %v1109
      %v1111 = vrot.slane %v1110, 2
      %v1112 = vadd.f32 %v1110, %v1111
      %v1113 = vrot.slane %v1112, 1
      %v1114 = vadd.f32 %v1112, %v1113
      %v1115 = vadd.f32 %v1020, %v1021
      %v1116 = vrot.slane %v1115, 4
      %v1117 = vadd.f32 %v1115, %v1116
      %v1118 = vrot.slane %v1117, 2
      %v1119 = vadd.f32 %v1117, %v1118
      %v1120 = vrot.slane %v1119, 1
      %v1121 = vadd.f32 %v1119, %v1120
      %v1122 = vadd.f32 %v1022, %v1023
      %v1123 = vrot.slane %v1122, 4
      %v1124 = vadd.f32 %v1122, %v1123
      %v1125 = vrot.slane %v1124, 2
      %v1126 = vadd.f32 %v1124, %v1125
      %v1127 = vrot.slane %v1126, 1
      %v1128 = vadd.f32 %v1126, %v1127
      %v1129 = vadd.f32 %v1024, %v1025
      %v1130 = vrot.slane %v1129, 4
      %v1131 = vadd.f32 %v1129, %v1130
      %v1132 = vrot.slane %v1131, 2
      %v1133 = vadd.f32 %v1131, %v1132
      %v1134 = vrot.slane %v1133, 1
      %v1135 = vadd.f32 %v1133, %v1134
      %v1136 = vadd.f32 %v1026, %v1027
      %v1137 = vrot.slane %v1136, 4
      %v1138 = vadd.f32 %v1136, %v1137
      %v1139 = vrot.slane %v1138, 2
      %v1140 = vadd.f32 %v1138, %v1139
      %v1141 = vrot.slane %v1140, 1
      %v1142 = vadd.f32 %v1140, %v1141
      %v1143 = vadd.f32 %v1028, %v1029
      %v1144 = vrot.slane %v1143, 4
      %v1145 = vadd.f32 %v1143, %v1144
      %v1146 = vrot.slane %v1145, 2
      %v1147 = vadd.f32 %v1145, %v1146
      %v1148 = vrot.slane %v1147, 1
      %v1149 = vadd.f32 %v1147, %v1148
      %v1150 = vadd.f32 %v1030, %v1031
      %v1151 = vrot.slane %v1150, 4
      %v1152 = vadd.f32 %v1150, %v1151
      %v1153 = vrot.slane %v1152, 2
      %v1154 = vadd.f32 %v1152, %v1153
      %v1155 = vrot.slane %v1154, 1
      %v1156 = vadd.f32 %v1154, %v1155
      %v1157 = vadd.f32 %v1032, %v1033
      %v1158 = vrot.slane %v1157, 4
      %v1159 = vadd.f32 %v1157, %v1158
      %v1160 = vrot.slane %v1159, 2
      %v1161 = vadd.f32 %v1159, %v1160
      %v1162 = vrot.slane %v1161, 1
      %v1163 = vadd.f32 %v1161, %v1162
      %v1164 = vadd.f32 %v1034, %v1035
      %v1165 = vrot.slane %v1164, 4
      %v1166 = vadd.f32 %v1164, %v1165
      %v1167 = vrot.slane %v1166, 2
      %v1168 = vadd.f32 %v1166, %v1167
      %v1169 = vrot.slane %v1168, 1
      %v1170 = vadd.f32 %v1168, %v1169
      %v1171 = vadd.f32 %v1036, %v1037
      %v1172 = vrot.slane %v1171, 4
      %v1173 = vadd.f32 %v1171, %v1172
      %v1174 = vrot.slane %v1173, 2
      %v1175 = vadd.f32 %v1173, %v1174
      %v1176 = vrot.slane %v1175, 1
      %v1177 = vadd.f32 %v1175, %v1176
      %v1178 = vadd.f32 %v1038, %v1039
      %v1179 = vrot.slane %v1178, 4
      %v1180 = vadd.f32 %v1178, %v1179
      %v1181 = vrot.slane %v1180, 2
      %v1182 = vadd.f32 %v1180, %v1181
      %v1183 = vrot.slane %v1182, 1
      %v1184 = vadd.f32 %v1182, %v1183
      %v1185 = vadd.f32 %v1040, %v1041
      %v1186 = vrot.slane %v1185, 4
      %v1187 = vadd.f32 %v1185, %v1186
      %v1188 = vrot.slane %v1187, 2
      %v1189 = vadd.f32 %v1187, %v1188
      %v1190 = vrot.slane %v1189, 1
      %v1191 = vadd.f32 %v1189, %v1190
      %v1192 = vadd.f32 %v1042, %v1043
      %v1193 = vrot.slane %v1192, 4
      %v1194 = vadd.f32 %v1192, %v1193
      %v1195 = vrot.slane %v1194, 2
      %v1196 = vadd.f32 %v1194, %v1195
      %v1197 = vrot.slane %v1196, 1
      %v1198 = vadd.f32 %v1196, %v1197
      %v1199 = vadd.f32 %v1044, %v1045
      %v1200 = vrot.slane %v1199, 4
      %v1201 = vadd.f32 %v1199, %v1200
      %v1202 = vrot.slane %v1201, 2
      %v1203 = vadd.f32 %v1201, %v1202
      %v1204 = vrot.slane %v1203, 1
      %v1205 = vadd.f32 %v1203, %v1204
      %v1206 = vadd.f32 %v1046, %v1047
      %v1207 = vrot.slane %v1206, 4
      %v1208 = vadd.f32 %v1206, %v1207
      %v1209 = vrot.slane %v1208, 2
      %v1210 = vadd.f32 %v1208, %v1209
      %v1211 = vrot.slane %v1210, 1
      %v1212 = vadd.f32 %v1210, %v1211
      %v1213 = vadd.f32 %v1048, %v1049
      %v1214 = vrot.slane %v1213, 4
      %v1215 = vadd.f32 %v1213, %v1214
      %v1216 = vrot.slane %v1215, 2
      %v1217 = vadd.f32 %v1215, %v1216
      %v1218 = vrot.slane %v1217, 1
      %v1219 = vadd.f32 %v1217, %v1218
      %v1220 = vadd.f32 %v1050, %v1051
      %v1221 = vrot.slane %v1220, 4
      %v1222 = vadd.f32 %v1220, %v1221
      %v1223 = vrot.slane %v1222, 2
      %v1224 = vadd.f32 %v1222, %v1223
      %v1225 = vrot.slane %v1224, 1
      %v1226 = vadd.f32 %v1224, %v1225
      %v1227 = vadd.f32 %v1052, %v1053
      %v1228 = vrot.slane %v1227, 4
      %v1229 = vadd.f32 %v1227, %v1228
      %v1230 = vrot.slane %v1229, 2
      %v1231 = vadd.f32 %v1229, %v1230
      %v1232 = vrot.slane %v1231, 1
      %v1233 = vadd.f32 %v1231, %v1232
      %v1234 = vadd.f32 %v1054, %v1055
      %v1235 = vrot.slane %v1234, 4
      %v1236 = vadd.f32 %v1234, %v1235
      %v1237 = vrot.slane %v1236, 2
      %v1238 = vadd.f32 %v1236, %v1237
      %v1239 = vrot.slane %v1238, 1
      %v1240 = vadd.f32 %v1238, %v1239
      %v1241 = vadd.f32 %v1056, %v1057
      %v1242 = vrot.slane %v1241, 4
      %v1243 = vadd.f32 %v1241, %v1242
      %v1244 = vrot.slane %v1243, 2
      %v1245 = vadd.f32 %v1243, %v1244
      %v1246 = vrot.slane %v1245, 1
      %v1247 = vadd.f32 %v1245, %v1246
      %v1248 = vadd.f32 %v1058, %v1059
      %v1249 = vrot.slane %v1248, 4
      %v1250 = vadd.f32 %v1248, %v1249
      %v1251 = vrot.slane %v1250, 2
      %v1252 = vadd.f32 %v1250, %v1251
      %v1253 = vrot.slane %v1252, 1
      %v1254 = vadd.f32 %v1252, %v1253
      %v1255 = vadd.f32 %v1060, %v1061
      %v1256 = vrot.slane %v1255, 4
      %v1257 = vadd.f32 %v1255, %v1256
      %v1258 = vrot.slane %v1257, 2
      %v1259 = vadd.f32 %v1257, %v1258
      %v1260 = vrot.slane %v1259, 1
      %v1261 = vadd.f32 %v1259, %v1260
      %v1262 = vadd.f32 %v1062, %v1063
      %v1263 = vrot.slane %v1262, 4
      %v1264 = vadd.f32 %v1262, %v1263
      %v1265 = vrot.slane %v1264, 2
      %v1266 = vadd.f32 %v1264, %v1265
      %v1267 = vrot.slane %v1266, 1
      %v1268 = vadd.f32 %v1266, %v1267
      %v1269 = vadd.f32 %v1064, %v1065
      %v1270 = vrot.slane %v1269, 4
      %v1271 = vadd.f32 %v1269, %v1270
      %v1272 = vrot.slane %v1271, 2
      %v1273 = vadd.f32 %v1271, %v1272
      %v1274 = vrot.slane %v1273, 1
      %v1275 = vadd.f32 %v1273, %v1274
      %v1276 = vadd.f32 %v1066, %v1067
      %v1277 = vrot.slane %v1276, 4
      %v1278 = vadd.f32 %v1276, %v1277
      %v1279 = vrot.slane %v1278, 2
      %v1280 = vadd.f32 %v1278, %v1279
      %v1281 = vrot.slane %v1280, 1
      %v1282 = vadd.f32 %v1280, %v1281
      %v1283 = vadd.f32 %v1068, %v1069
      %v1284 = vrot.slane %v1283, 4
      %v1285 = vadd.f32 %v1283, %v1284
      %v1286 = vrot.slane %v1285, 2
      %v1287 = vadd.f32 %v1285, %v1286
      %v1288 = vrot.slane %v1287, 1
      %v1289 = vadd.f32 %v1287, %v1288
      %v1290 = vadd.f32 %v1070, %v1071
      %v1291 = vrot.slane %v1290, 4
      %v1292 = vadd.f32 %v1290, %v1291
      %v1293 = vrot.slane %v1292, 2
      %v1294 = vadd.f32 %v1292, %v1293
      %v1295 = vrot.slane %v1294, 1
      %v1296 = vadd.f32 %v1294, %v1295
      %v1297 = vadd.f32 %v1072, %v1073
      %v1298 = vrot.slane %v1297, 4
      %v1299 = vadd.f32 %v1297, %v1298
      %v1300 = vrot.slane %v1299, 2
      %v1301 = vadd.f32 %v1299, %v1300
      %v1302 = vrot.slane %v1301, 1
      %v1303 = vadd.f32 %v1301, %v1302
      %v1304 = vadd.f32 %v1074, %v1075
      %v1305 = vrot.slane %v1304, 4
      %v1306 = vadd.f32 %v1304, %v1305
      %v1307 = vrot.slane %v1306, 2
      %v1308 = vadd.f32 %v1306, %v1307
      %v1309 = vrot.slane %v1308, 1
      %v1310 = vadd.f32 %v1308, %v1309
      %v1311 = vadd.f32 %v1076, %v1077
      %v1312 = vrot.slane %v1311, 4
      %v1313 = vadd.f32 %v1311, %v1312
      %v1314 = vrot.slane %v1313, 2
      %v1315 = vadd.f32 %v1313, %v1314
      %v1316 = vrot.slane %v1315, 1
      %v1317 = vadd.f32 %v1315, %v1316
      %v1318 = vadd.f32 %v1078, %v1079
      %v1319 = vrot.slane %v1318, 4
      %v1320 = vadd.f32 %v1318, %v1319
      %v1321 = vrot.slane %v1320, 2
      %v1322 = vadd.f32 %v1320, %v1321
      %v1323 = vrot.slane %v1322, 1
      %v1324 = vadd.f32 %v1322, %v1323
      %v1325 = vadd.f32 %v1080, %v1081
      %v1326 = vrot.slane %v1325, 4
      %v1327 = vadd.f32 %v1325, %v1326
      %v1328 = vrot.slane %v1327, 2
      %v1329 = vadd.f32 %v1327, %v1328
      %v1330 = vrot.slane %v1329, 1
      %v1331 = vadd.f32 %v1329, %v1330
      %v1332 = vadd.f32 %v1082, %v1083
      %v1333 = vrot.slane %v1332, 4
      %v1334 = vadd.f32 %v1332, %v1333
      %v1335 = vrot.slane %v1334, 2
      %v1336 = vadd.f32 %v1334, %v1335
      %v1337 = vrot.slane %v1336, 1
      %v1338 = vadd.f32 %v1336, %v1337
      %v1339 = vadd.f32 %v1084, %v1085
      %v1340 = vrot.slane %v1339, 4
      %v1341 = vadd.f32 %v1339, %v1340
      %v1342 = vrot.slane %v1341, 2
      %v1343 = vadd.f32 %v1341, %v1342
      %v1344 = vrot.slane %v1343, 1
      %v1345 = vadd.f32 %v1343, %v1344
      %v1346 = vadd.f32 %v1086, %v1087
      %v1347 = vrot.slane %v1346, 4
      %v1348 = vadd.f32 %v1346, %v1347
      %v1349 = vrot.slane %v1348, 2
      %v1350 = vadd.f32 %v1348, %v1349
      %v1351 = vrot.slane %v1350, 1
      %v1352 = vadd.f32 %v1350, %v1351
      %v1353 = vadd.f32 %v1088, %v1089
      %v1354 = vrot.slane %v1353, 4
      %v1355 = vadd.f32 %v1353, %v1354
      %v1356 = vrot.slane %v1355, 2
      %v1357 = vadd.f32 %v1355, %v1356
      %v1358 = vrot.slane %v1357, 1
      %v1359 = vadd.f32 %v1357, %v1358
      %v1360 = vadd.f32 %v1090, %v1091
      %v1361 = vrot.slane %v1360, 4
      %v1362 = vadd.f32 %v1360, %v1361
      %v1363 = vrot.slane %v1362, 2
      %v1364 = vadd.f32 %v1362, %v1363
      %v1365 = vrot.slane %v1364, 1
      %v1366 = vadd.f32 %v1364, %v1365
      %v1367 = vadd.f32 %v1092, %v1093
      %v1368 = vrot.slane %v1367, 4
      %v1369 = vadd.f32 %v1367, %v1368
      %v1370 = vrot.slane %v1369, 2
      %v1371 = vadd.f32 %v1369, %v1370
      %v1372 = vrot.slane %v1371, 1
      %v1373 = vadd.f32 %v1371, %v1372
      %v1374 = vpack.c.bf16 %v1100, %v1100
      %v1375 = vpack.c.bf16 %v1107, %v1107
      %v1376 = vpack.c.bf16 %v1114, %v1114
      %v1377 = vpack.c.bf16 %v1121, %v1121
      %v1378 = vpack.c.bf16 %v1128, %v1128
      %v1379 = vpack.c.bf16 %v1135, %v1135
      %v1380 = vpack.c.bf16 %v1142, %v1142
      %v1381 = vpack.c.bf16 %v1149, %v1149
      %v1382 = vpack.c.bf16 %v1156, %v1156
      %v1383 = vpack.c.bf16 %v1163, %v1163
      %v1384 = vpack.c.bf16 %v1170, %v1170
      %v1385 = vpack.c.bf16 %v1177, %v1177
      %v1386 = vpack.c.bf16 %v1184, %v1184
      %v1387 = vpack.c.bf16 %v1191, %v1191
      %v1388 = vpack.c.bf16 %v1198, %v1198
      %v1389 = vpack.c.bf16 %v1205, %v1205
      %v1390 = vpack.c.bf16 %v1212, %v1212
      %v1391 = vpack.c.bf16 %v1219, %v1219
      %v1392 = vpack.c.bf16 %v1226, %v1226
      %v1393 = vpack.c.bf16 %v1233, %v1233
      %v1394 = vpack.c.bf16 %v1240, %v1240
      %v1395 = vpack.c.bf16 %v1247, %v1247
      %v1396 = vpack.c.bf16 %v1254, %v1254
      %v1397 = vpack.c.bf16 %v1261, %v1261
      %v1398 = vpack.c.bf16 %v1268, %v1268
      %v1399 = vpack.c.bf16 %v1275, %v1275
      %v1400 = vpack.c.bf16 %v1282, %v1282
      %v1401 = vpack.c.bf16 %v1289, %v1289
      %v1402 = vpack.c.bf16 %v1296, %v1296
      %v1403 = vpack.c.bf16 %v1303, %v1303
      %v1404 = vpack.c.bf16 %v1310, %v1310
      %v1405 = vpack.c.bf16 %v1317, %v1317
      %v1406 = vpack.c.bf16 %v1324, %v1324
      %v1407 = vpack.c.bf16 %v1331, %v1331
      %v1408 = vpack.c.bf16 %v1338, %v1338
      %v1409 = vpack.c.bf16 %v1345, %v1345
      %v1410 = vpack.c.bf16 %v1352, %v1352
      %v1411 = vpack.c.bf16 %v1359, %v1359
      %v1412 = vpack.c.bf16 %v1366, %v1366
      %v1413 = vpack.c.bf16 %v1373, %v1373
      %v1414 = vld [vmem:[%s3] sm:$0xf]
      %v1415 = vld [vmem:[%s3 + $0x4] sm:$0xf]
      %v1416 = vld [vmem:[%s3 + $0x8] sm:$0xf]
      %v1417 = vld [vmem:[%s3 + $0xc] sm:$0xf]
      %v1418 = vld [vmem:[%s3 + $0x10] sm:$0xf]
      %v1419 = vld [vmem:[%s3 + $0x14] sm:$0xf]
      %v1420 = vld [vmem:[%s3 + $0x18] sm:$0xf]
      %v1421 = vld [vmem:[%s3 + $0x1c] sm:$0xf]
      %v1422 = vld [vmem:[%s3 + $0x20] sm:$0xf]
      %v1423 = vld [vmem:[%s3 + $0x24] sm:$0xf]
      %v1424 = vld [vmem:[%s3 + $0x28] sm:$0xf]
      %v1425 = vld [vmem:[%s3 + $0x2c] sm:$0xf]
      %v1426 = vld [vmem:[%s3 + $0x30] sm:$0xf]
      %v1427 = vld [vmem:[%s3 + $0x34] sm:$0xf]
      %v1428 = vld [vmem:[%s3 + $0x38] sm:$0xf]
      %v1429 = vld [vmem:[%s3 + $0x3c] sm:$0xf]
      %v1430 = vld [vmem:[%s4] sm:$0x1]
      %v1432 = vlaneseq
      %v1433 = vshrl.u32 %v1432, 7
      %v1434 = vsub.s32 0, %v1433
      %v1435 = vrot.slane %v1430, %v1434
      %v1477 = vunpack.c.l.b16 %v1374
      %v1478 = vunpack.c.l.b16 %v1375
      %v1479 = vunpack.c.l.b16 %v1376
      %v1480 = vunpack.c.l.b16 %v1377
      %v1481 = vunpack.c.l.b16 %v1378
      %v1482 = vunpack.c.l.b16 %v1379
      %v1483 = vunpack.c.l.b16 %v1380
      %v1484 = vunpack.c.l.b16 %v1381
      %v1485 = vunpack.c.l.b16 %v1382
      %v1486 = vunpack.c.l.b16 %v1383
      %v1487 = vunpack.c.l.b16 %v1384
      %v1488 = vunpack.c.l.b16 %v1385
      %v1489 = vunpack.c.l.b16 %v1386
      %v1490 = vunpack.c.l.b16 %v1387
      %v1491 = vunpack.c.l.b16 %v1388
      %v1492 = vunpack.c.l.b16 %v1389
      %v1493 = vunpack.c.l.b16 %v1390
      %v1494 = vunpack.c.l.b16 %v1391
      %v1495 = vunpack.c.l.b16 %v1392
      %v1496 = vunpack.c.l.b16 %v1393
      %v1497 = vunpack.c.l.b16 %v1394
      %v1498 = vunpack.c.l.b16 %v1395
      %v1499 = vunpack.c.l.b16 %v1396
      %v1500 = vunpack.c.l.b16 %v1397
      %v1501 = vunpack.c.l.b16 %v1398
      %v1502 = vunpack.c.l.b16 %v1399
      %v1503 = vunpack.c.l.b16 %v1400
      %v1504 = vunpack.c.l.b16 %v1401
      %v1505 = vunpack.c.l.b16 %v1402
      %v1506 = vunpack.c.l.b16 %v1403
      %v1507 = vunpack.c.l.b16 %v1404
      %v1508 = vunpack.c.l.b16 %v1405
      %v1509 = vunpack.c.l.b16 %v1406
      %v1510 = vunpack.c.l.b16 %v1407
      %v1511 = vunpack.c.l.b16 %v1408
      %v1512 = vunpack.c.l.b16 %v1409
      %v1513 = vunpack.c.l.b16 %v1410
      %v1514 = vunpack.c.l.b16 %v1411
      %v1515 = vunpack.c.l.b16 %v1412
      %v1516 = vunpack.c.l.b16 %v1413
      %vm1517 = vcmask 1041409
      %v1518 = vsel %vm1517, %v1478, %v1477
      %vm1519 = vcmask 1042434
      %v1520 = vsel %vm1519, %v1479, %v1518
      %vm1521 = vcmask 1043459
      %v1522 = vsel %vm1521, %v1480, %v1520
      %vm1523 = vcmask 1044484
      %v1524 = vsel %vm1523, %v1481, %v1522
      %vm1525 = vcmask 1045509
      %v1526 = vsel %vm1525, %v1482, %v1524
      %vm1527 = vcmask 1046534
      %v1528 = vsel %vm1527, %v1483, %v1526
      %vm1529 = vcmask 1047559
      %v1530 = vsel %vm1529, %v1484, %v1528
      %v1531 = vsel %vm1517, %v1486, %v1485
      %v1532 = vsel %vm1519, %v1487, %v1531
      %v1533 = vsel %vm1521, %v1488, %v1532
      %v1534 = vsel %vm1523, %v1489, %v1533
      %v1535 = vsel %vm1525, %v1490, %v1534
      %v1536 = vsel %vm1527, %v1491, %v1535
      %v1537 = vsel %vm1529, %v1492, %v1536
      %v1538 = vsel %vm1517, %v1494, %v1493
      %v1539 = vsel %vm1519, %v1495, %v1538
      %v1540 = vsel %vm1521, %v1496, %v1539
      %v1541 = vsel %vm1523, %v1497, %v1540
      %v1542 = vsel %vm1525, %v1498, %v1541
      %v1543 = vsel %vm1527, %v1499, %v1542
      %v1544 = vsel %vm1529, %v1500, %v1543
      %v1545 = vsel %vm1517, %v1502, %v1501
      %v1546 = vsel %vm1519, %v1503, %v1545
      %v1547 = vsel %vm1521, %v1504, %v1546
      %v1548 = vsel %vm1523, %v1505, %v1547
      %v1549 = vsel %vm1525, %v1506, %v1548
      %v1550 = vsel %vm1527, %v1507, %v1549
      %v1551 = vsel %vm1529, %v1508, %v1550
      %v1552 = vsel %vm1517, %v1510, %v1509
      %v1553 = vsel %vm1519, %v1511, %v1552
      %v1554 = vsel %vm1521, %v1512, %v1553
      %v1555 = vsel %vm1523, %v1513, %v1554
      %v1556 = vsel %vm1525, %v1514, %v1555
      %v1557 = vsel %vm1527, %v1515, %v1556
      %v1558 = vsel %vm1529, %v1516, %v1557
      %v1559 = vpack.c.b16 %v1537, %v1530
      %v1560 = vpack.c.b16 %v1551, %v1544
      %v1561 = vpack.c.b16 %v1558, %v1558
      %v1581 = vunpack.c.l.b16 %v1414
      %v1582 = vunpack.c.l.b16 %v1415
      %v1583 = vunpack.c.l.b16 %v1416
      %v1584 = vunpack.c.l.b16 %v1417
      %v1585 = vunpack.c.l.b16 %v1418
      %v1586 = vunpack.c.l.b16 %v1419
      %v1587 = vunpack.c.l.b16 %v1420
      %v1588 = vunpack.c.l.b16 %v1421
      %v1589 = vunpack.c.l.b16 %v1422
      %v1590 = vunpack.c.l.b16 %v1423
      %v1591 = vunpack.c.l.b16 %v1424
      %v1592 = vunpack.c.l.b16 %v1425
      %v1593 = vunpack.c.l.b16 %v1426
      %v1594 = vunpack.c.l.b16 %v1427
      %v1595 = vunpack.c.l.b16 %v1428
      %v1596 = vunpack.c.l.b16 %v1429
      %v1597 = vpack.c.b16 %v1582, %v1581
      %v1598 = vpack.c.b16 %v1584, %v1583
      %v1599 = vpack.c.b16 %v1586, %v1585
      %v1600 = vpack.c.b16 %v1588, %v1587
      %v1601 = vpack.c.b16 %v1590, %v1589
      %v1602 = vpack.c.b16 %v1592, %v1591
      %v1603 = vpack.c.b16 %v1594, %v1593
      %v1604 = vpack.c.b16 %v1596, %v1595
      %1613 = vmatprep.subr.bf16.mxu0 0
      %1614 = vmatpush1.bf16.msra.mxu0 %v1604
      %1615 = vmatprep.subr.bf16.mxu0 0
      %1616 = vmatpush1.bf16.msra.mxu0 %v1603
      %1617 = vmatprep.subr.bf16.mxu0 0
      %1618 = vmatpush1.bf16.msra.mxu0 %v1602
      %1619 = vmatprep.subr.bf16.mxu0 0
      %1620 = vmatpush1.bf16.msra.mxu0 %v1601
      %1621 = vmatprep.subr.bf16.mxu0 0
      %1622 = vmatpush1.bf16.msra.mxu0 %v1600
      %1623 = vmatprep.subr.bf16.mxu0 0
      %1624 = vmatpush1.bf16.msra.mxu0 %v1599
      %1625 = vmatprep.subr.bf16.mxu0 0
      %1626 = vmatpush1.bf16.msra.mxu0 %v1598
      %1627 = vmatprep.subr.bf16.mxu0 0
      %1628 = vmatpush1.bf16.msra.mxu0 %v1597
      %1629 = vmatprep.subr.bf16.mxu0 0
      %1630 = vmatpush2.bf16.msra.mxu0 0
      %1631 = vmatprep.subr.bf16.mxu0 0
      %1632 = vmatpush2.bf16.msra.mxu0 0
      %1633 = vmatprep.subr.bf16.mxu0 0
      %1634 = vmatpush2.bf16.msra.mxu0 0
      %1635 = vmatprep.subr.bf16.mxu0 0
      %1636 = vmatpush2.bf16.msra.mxu0 0
      %1637 = vmatprep.subr.bf16.mxu0 0
      %1638 = vmatpush2.bf16.msra.mxu0 0
      %1639 = vmatprep.subr.bf16.mxu0 0
      %1640 = vmatpush2.bf16.msra.mxu0 0
      %1641 = vmatprep.subr.bf16.mxu0 0
      %1642 = vmatpush2.bf16.msra.mxu0 0
      %1643 = vmatprep.subr.bf16.mxu0 0
      %1644 = vmatpush2.bf16.msra.mxu0 0
      %1645 = vmatprep.mubr.bf16.mxu0 0
      %1646 = vmatmul.mubr.bf16.gmra.mxu0 %v1559
      %v1647 = vpop.f32.mrf.mxu0
      %v1648 = vadd.f32 %v1435, %v1647
      %v1649 = vpop.f32.mrf.mxu0
      %v1650 = vpop.f32.mrf.mxu0
      %v1651 = vadd.f32 %v1435, %v1650
      %v1652 = vpop.f32.mrf.mxu0
      %1653 = vmatprep.mubr.bf16.mxu0 0
      %1654 = vmatmul.mubr.bf16.gmra.mxu0 %v1560
      %v1655 = vpop.f32.mrf.mxu0
      %v1656 = vadd.f32 %v1435, %v1655
      %v1657 = vpop.f32.mrf.mxu0
      %v1658 = vpop.f32.mrf.mxu0
      %v1659 = vadd.f32 %v1435, %v1658
      %v1660 = vpop.f32.mrf.mxu0
      %1661 = vmatprep.mubr.bf16.mxu0 0
      %1662 = vmatmul.mubr.bf16.gmra.mxu0 %v1561
      %v1663 = vpop.f32.mrf.mxu0
      %v1664 = vadd.f32 %v1435, %v1663
      %v1665 = vpop.f32.mrf.mxu0
      %v1666 = vpop.f32.mrf.mxu0
      %v1667 = vpop.f32.mrf.mxu0
      %1668 = vdwg.mxu0
      %1669 = vst [vmem:[%s226] sm:$0xff] %v1648
      %1670 = vst [vmem:[%s226 + $0x8] sm:$0xff] %v1651
      %1671 = vst [vmem:[%s226 + $0x10] sm:$0xff] %v1656
      %1672 = vst [vmem:[%s226 + $0x18] sm:$0xff] %v1659
      %1673 = vst [vmem:[%s226 + $0x20] sm:$0xff] %v1664
      %s1674 = smul.u32 5, %s16
      %p1675 = scmp.lt.s32.totalorder %s1674, 9
      %s1676 = scalar_select %p1675, %s1674, 9
      %s1677 = smul.addr %s1676, 8
      %s1678 = scalar_lea.vmem %s5, %s1677
      // Predicated region
      $region41: #{feature_extractor_forward.1} parent=39 // pred_check
        %p1679 = pneg %p144
      $region42: #{feature_extractor_forward.1} parent=39 // pred_check_branch
        %1681 = sbr.rel (%p1679) target = $region44
      $region43: #{feature_extractor_forward.1} parent=39 // pred_region
        %s1682 = smul.u32 5, %s16
      $region44: #{feature_extractor_forward.1} parent=39 // pred_fallthru
        _
    $region40: #{feature_extractor_forward.1} parent=5 // pred_fallthru
      _
    %p1683 = scmp.le.s32.totalorder 2, %s11
    // Predicated region
    $region45: #{feature_extractor_forward.1} parent=5 // pred_check
      %p1684 = pneg %p1683
    $region46: #{feature_extractor_forward.1} parent=5 // pred_check_branch
      %1686 = sbr.rel (%p1684) target = $region48
    $region47: #{feature_extractor_forward.1} parent=5 // pred_region
      %s1687 = ssub.s32 %s11, 2
      // Predicated region
      $region49: #{feature_extractor_forward.1} parent=47 // pred_check
        %p1688 = pneg %p150
      $region50: #{feature_extractor_forward.1} parent=47 // pred_check_branch
        %1690 = sbr.rel (%p1688) target = $region52
      $region51: #{feature_extractor_forward.1} parent=47 // pred_region
        %s1691 = smul.u32 5, %s17
        %p1692 = scmp.lt.s32.totalorder %s1691, 9
        %s1693 = scalar_select %p1692, %s1691, 9
        %s1694 = smul.addr %s1693, 8
        %s1695 = scalar_lea.vmem %s5, %s1694
      $region52: #{feature_extractor_forward.1} parent=47 // pred_fallthru
        _
    $region48: #{feature_extractor_forward.1} parent=5 // pred_fallthru
      _
  $region6: #{feature_extractor_forward.1} parent=0 // loop_footer
    %s15 = sadd.s32 1, %s11
  $region7: #{feature_extractor_forward.1} parent=0 // loop_footer_branch
    %10 = sbr.rel target = $region3
  $region8: #{feature_extractor_forward.1} parent=0 // loop_exit
    _

</llo_original>
